<compile_context>
chip_gen: v5e
topology: v5e:2x2
jax: 0.10.0
libtpu: 0.0.40
codegen_flags: <defaults>
</compile_context>

<pallas_src>
import jax
import jax.numpy as jnp
from jax import lax
from jax.experimental import pallas as pl
from jax.experimental.pallas import tpu as pltpu  # noqa: F401  (kept for CompilerParams use at larger shapes)


# ------------------------------------------------------------------
# Pallas kernel: one GRU layer, BOTH directions fused in one body.
#   gi   : (T, B, 6H) f32, gate-major columns [r_f r_b | z_f z_b | n_f n_b],
#          backward columns already time-flipped.
#   Wblk : (2H, 6H)  bf16, block-diagonal per gate (rows [h_f | h_b]).
#   bhn  : (1, 2H)   f32,  [b_hn_f | b_hn_b].
#   mask : (T, B, 2H) f32, columns [fwd valid | bwd(flipped) valid].
# Outputs:
#   out  : (T, B, 2H) f32, [fwd at t | bwd at flipped t], padded steps zeroed.
#   hN   : (B, 2H)    f32, [fwd final | bwd final].
# ------------------------------------------------------------------
def _make_fused_bidir_gru_kernel(T: int, B: int, H: int, unroll):
    H2 = 2 * H

    def kernel(gi_ref, wblk_ref, bhn_ref, mask_ref, out_ref, hN_ref):
        # Hoist loop-invariant loads / broadcasts out of the (unrolled) time loop.
        w_blk = wblk_ref[...]                                    # (2H, 6H) bf16
        b_hn = jnp.broadcast_to(bhn_ref[...], (B, H2))           # (B, 2H)  f32

        # init_state=None in the PyTorch module -> zero initial hidden state.
        h0 = jnp.zeros((B, H2), jnp.float32)

        def body(i, h):
            # Single block-diagonal hidden matmul drives BOTH directions' chains:
            # bf16 operands, f32 accumulation.  h stays in registers (loop carry).
            gh = jnp.dot(h.astype(jnp.bfloat16), w_blk,
                         preferred_element_type=jnp.float32)     # (B, 6H) f32
            gi = gi_ref[i]                                       # (B, 6H) f32 (static idx when unrolled)

            r = jax.nn.sigmoid(gi[:, :H2] + gh[:, :H2])
            z = jax.nn.sigmoid(gi[:, H2:2 * H2] + gh[:, H2:2 * H2])
            n = jnp.tanh(gi[:, 2 * H2:] + r * (gh[:, 2 * H2:] + b_hn))
            h_new = (1.0 - z) * n + z * h                        # (B, 2H) f32

            valid = mask_ref[i] != 0.0                           # (B, 2H) bool
            out_ref[i] = jnp.where(valid, h_new, 0.0)            # zero padded outputs
            return jnp.where(valid, h_new, h)                    # freeze h past seq_len

        hN_ref[...] = lax.fori_loop(0, T, body, h0, unroll=unroll)

    return kernel


# ------------------------------------------------------------------
# Per-layer parameter packing (PyTorch nn.GRU layout -> fused kernel layout).
# ------------------------------------------------------------------
def _stack_layer_params(lp):
    H = lp['fwd']['w_hh'].shape[1]

    def prep(dname):
        p = lp[dname]
        w_i = p['w_ih'].T                                   # (Din, 3H), gate order [r,z,n]
        w_h = p['w_hh'].T                                   # (H,   3H)
        # r/z gates: fold both biases into the input projection.
        # n gate   : fold b_in only; b_hn must be added inside r*(gh_n + b_hn).
        b_i = jnp.concatenate([p['b_ih'][:2 * H] + p['b_hh'][:2 * H], p['b_ih'][2 * H:]])
        b_hn = p['b_hh'][2 * H:]
        return w_i, w_h, b_i, b_hn

    wi_f, wh_f, bi_f, bhn_f = prep('fwd')
    wi_b, wh_b, bi_b, bhn_b = prep('bwd')

    def blkdiag(a, b):
        z = jnp.zeros_like(a)
        return jnp.concatenate([jnp.concatenate([a, z], axis=1),
                                jnp.concatenate([z, b], axis=1)], axis=0)  # (2H, 2H)

    # (2H, 6H): gate-major [r | z | n], each gate block-diagonal over {fwd, bwd}.
    w_blk = jnp.concatenate(
        [blkdiag(wh_f[:, g * H:(g + 1) * H], wh_b[:, g * H:(g + 1) * H]) for g in range(3)],
        axis=1)

    return {
        'w_i': jnp.stack([wi_f, wi_b]).astype(jnp.bfloat16),            # (2, Din, 3H)
        'b_i': jnp.stack([bi_f, bi_b]).astype(jnp.float32),             # (2, 3H)
        'w_blk': w_blk.astype(jnp.bfloat16),                            # (2H, 6H)
        'b_hn': jnp.concatenate([bhn_f, bhn_b])[None, :].astype(jnp.float32),  # (1, 2H)
    }


def _run_bidir_layer(x, valid_tb, sp, *, unroll=None):
    """One bidirectional GRU layer. x: (T, B, Din) f32. Returns ((T,B,2H), (B,2H))."""
    T, B, _ = x.shape
    H2 = sp['w_blk'].shape[0]
    H = H2 // 2

    # Input projection hoisted out of the serial recurrence: one large parallel bf16
    # matmul over all (direction, time, batch), f32 accumulation, biases folded in.
    gi2 = (jnp.einsum('tbd,ndg->ntbg', x.astype(jnp.bfloat16), sp['w_i'],
                      preferred_element_type=jnp.float32)
           + sp['b_i'][:, None, None, :])                                # (2, T, B, 3H) f32

    # Pre-flip the backward direction along time so the kernel walks static t = 0..T-1,
    # and interleave the gates so each gate occupies a contiguous 2H-lane band [fwd|bwd].
    gi_f, gi_b = gi2[0], gi2[1][::-1]
    gi = jnp.concatenate([gi_f[..., :H], gi_b[..., :H],
                          gi_f[..., H:2 * H], gi_b[..., H:2 * H],
                          gi_f[..., 2 * H:], gi_b[..., 2 * H:]], axis=-1)  # (T, B, 6H)

    # Per-step blend mask in the hidden-state layout [h_f | h_b]; backward half flipped.
    m_f = jnp.broadcast_to(valid_tb[:, :, None], (T, B, H))
    m_b = jnp.broadcast_to(valid_tb[::-1][:, :, None], (T, B, H))
    mask = jnp.concatenate([m_f, m_b], axis=-1).astype(jnp.float32)        # (T, B, 2H)

    # Full unroll for small T (best LLO scheduling), partial unroll for long T to keep
    # vreg pressure / instruction footprint bounded.
    if unroll is None:
        unroll = True if T <= 16 else 8

    kernel = _make_fused_bidir_gru_kernel(T, B, H, unroll)
    out, h_last = pl.pallas_call(
        kernel,
        out_shape=(jax.ShapeDtypeStruct((T, B, H2), jnp.float32),
                   jax.ShapeDtypeStruct((B, H2), jnp.float32)),
    )(gi, sp['w_blk'], sp['b_hn'], mask)

    # Un-flip the backward half along time and lay out features as [fwd | bwd].
    layer_out = jnp.concatenate([out[:, :, :H], out[::-1, :, H:]], axis=-1)  # (T, B, 2H)
    return layer_out, h_last


# ------------------------------------------------------------------
# Multi-layer bidirectional GRU wrapper (mirrors GRU.forward semantics).
# ------------------------------------------------------------------
def gru_forward(x, seq_len, params, *, unroll=None):
    """x: (T, B, input_dim); seq_len: (B,) int; params: list of per-layer dicts."""
    T, B, _ = x.shape
    lens = seq_len.astype(jnp.int32)
    # (T, B) validity mask: True where t < seq_len[b].
    valid_tb = jnp.arange(T, dtype=jnp.int32)[:, None] < lens[None, :]

    layer_in = x
    last_h = None
    for lp in params:
        sp = _stack_layer_params(lp)
        layer_in, last_h = _run_bidir_layer(layer_in, valid_tb, sp, unroll=unroll)
        # dropout=0.0 in the reference module -> no inter-layer dropout.
    return layer_in, last_h


# ------------------------------------------------------------------
# Pure-JAX reference (same math & matmul precision: bf16 operands, f32 accumulate).
# PyTorch's pure-f32 path differs from the bf16-MXU result at the ~1e-2 level only.
# ------------------------------------------------------------------
def _ref_gru_dir(x, lens, w_ih, w_hh, b_ih, b_hh, reverse):
    T, B, _ = x.shape
    H = w_hh.shape[1]
    wi = w_ih.T.astype(jnp.bfloat16)
    wh = w_hh.T.astype(jnp.bfloat16)
    h = jnp.zeros((B, H), jnp.float32)
    outs = [None] * T
    steps = range(T - 1, -1, -1) if reverse else range(T)
    for t in steps:
        gi = jnp.dot(x[t].astype(jnp.bfloat16), wi,
                     preferred_element_type=jnp.float32) + b_ih
        gh = jnp.dot(h.astype(jnp.bfloat16), wh,
                     preferred_element_type=jnp.float32) + b_hh
        r = jax.nn.sigmoid(gi[:, :H] + gh[:, :H])
        z = jax.nn.sigmoid(gi[:, H:2 * H] + gh[:, H:2 * H])
        n = jnp.tanh(gi[:, 2 * H:] + r * gh[:, 2 * H:])
        h_new = (1.0 - z) * n + z * h
        mask = (lens > t).reshape(B, 1)
        h = jnp.where(mask, h_new, h)
        outs[t] = jnp.where(mask, h_new, jnp.zeros_like(h_new))
    return jnp.stack(outs, axis=0), h


def _ref_gru_forward(x, seq_len, params):
    lens = seq_len.astype(jnp.int32)
    layer_in = x
    h_f = h_b = None
    for lp in params:
        out_f, h_f = _ref_gru_dir(layer_in, lens, lp['fwd']['w_ih'], lp['fwd']['w_hh'],
                                  lp['fwd']['b_ih'], lp['fwd']['b_hh'], False)
        out_b, h_b = _ref_gru_dir(layer_in, lens, lp['bwd']['w_ih'], lp['bwd']['w_hh'],
                                  lp['bwd']['b_ih'], lp['bwd']['b_hh'], True)
        layer_in = jnp.concatenate([out_f, out_b], axis=-1)
    return layer_in, jnp.concatenate([h_f, h_b], axis=1)


# ------------------------------------------------------------------
# Deterministic parameter construction (PyTorch nn.GRU shapes / init range).
# ------------------------------------------------------------------
def init_gru_params(key, num_layers, input_dim, hidden, bidirectional=True):
    params = []
    bound = 1.0 / jnp.sqrt(jnp.float32(hidden))
    num_dirs = 2 if bidirectional else 1
    for layer in range(num_layers):
        din = input_dim if layer == 0 else hidden * num_dirs
        layer_p = {}
        for dname in (('fwd', 'bwd') if bidirectional else ('fwd',)):
            key, k1, k2, k3, k4 = jax.random.split(key, 5)
            layer_p[dname] = {
                'w_ih': jax.random.uniform(k1, (3 * hidden, din), jnp.float32, -bound, bound),
                'w_hh': jax.random.uniform(k2, (3 * hidden, hidden), jnp.float32, -bound, bound),
                'b_ih': jax.random.uniform(k3, (3 * hidden,), jnp.float32, -bound, bound),
                'b_hh': jax.random.uniform(k4, (3 * hidden,), jnp.float32, -bound, bound),
            }
        params.append(layer_p)
    return params


if __name__ == "__main__":
    # Module config: layers=2, input_dim=16, output_dim(hidden)=32,
    # batch_first=False, bidirectional=True, dropout=0.0.
    num_layers, input_dim, hidden = 2, 16, 32
    T, B = 8, 2

    key = jax.random.PRNGKey(0)
    key, kx = jax.random.split(key)
    x = jax.random.normal(kx, (T, B, input_dim), jnp.float32)
    seq_len = jnp.array([8, 5], dtype=jnp.int32)  # variable lengths, max == T
    params = init_gru_params(key, num_layers, input_dim, hidden, bidirectional=True)

    padded_full, last_hidden = gru_forward(x, seq_len, params)
    # pad_packed_sequence truncates the time axis to max(seq_len) (host-known here).
    max_len = int(jax.device_get(seq_len).max())
    padding_out = padded_full[:max_len]

    padding_out = jax.block_until_ready(padding_out)
    last_hidden = jax.block_until_ready(last_hidden)

    # Sanity check against a pure-JAX reference of the same math / matmul precision.
    ref_full, ref_hidden = _ref_gru_forward(x, seq_len, params)
    ref_out = ref_full[:max_len]
    assert padding_out.shape == (max_len, B, 2 * hidden)
    assert last_hidden.shape == (B, 2 * hidden)
    assert jnp.allclose(padding_out, ref_out, atol=2e-3, rtol=2e-3)
    assert jnp.allclose(last_hidden, ref_hidden, atol=2e-3, rtol=2e-3)

    print("KERNEL_OK")
</pallas_src>

<mosaic_0001>
module attributes {stable_mosaic.version = 11 : i64} {
  func.func @kernel(%arg0: memref<8x2x192xf32, #tpu.memory_space<vmem>>, %arg1: memref<64x192xbf16, #tpu.memory_space<vmem>>, %arg2: memref<1x64xf32, #tpu.memory_space<vmem>>, %arg3: memref<8x2x64xf32, #tpu.memory_space<vmem>>, %arg4: memref<8x2x64xf32, #tpu.memory_space<vmem>>, %arg5: memref<2x64xf32, #tpu.memory_space<vmem>>) attributes {dimension_semantics = [], scalar_prefetch = 0 : i64, scratch_operands = 0 : i64, tpu.core_type = #tpu.core_type<tc>} {
    %c0 = arith.constant 0 : index
    %c0_0 = arith.constant 0 : index
    %0 = vector.load %arg1[%c0, %c0_0] : memref<64x192xbf16, #tpu.memory_space<vmem>>, vector<64x192xbf16>
    %c0_1 = arith.constant 0 : index
    %c0_2 = arith.constant 0 : index
    %1 = vector.load %arg2[%c0_1, %c0_2] : memref<1x64xf32, #tpu.memory_space<vmem>>, vector<1x64xf32>
    %2 = vector.shape_cast %1 : vector<1x64xf32> to vector<1x64xf32>
    %3 = vector.broadcast %2 : vector<1x64xf32> to vector<2x64xf32>
    %cst = arith.constant 0.000000e+00 : f32
    %4 = vector.broadcast %cst : f32 to vector<2x64xf32>
    %c0_i32 = arith.constant 0 : i32
    %5 = arith.truncf %4 : vector<2x64xf32> to vector<2x64xbf16>
    %cst_3 = arith.constant dense<0.000000e+00> : vector<2x192xf32>
    %6 = tpu.matmul %5, %0, %cst_3 {dimension_numbers = #tpu.dot_dimension_numbers<[1], [0], [0], [1], [0, 0, 1, 1], [], []>} : vector<2x64xbf16>, vector<64x192xbf16>, vector<2x192xf32> -> vector<2x192xf32>
    %7 = arith.index_cast %c0_i32 : i32 to index
    %c0_4 = arith.constant 0 : index
    %c0_5 = arith.constant 0 : index
    %8 = vector.load %arg0[%7, %c0_4, %c0_5] : memref<8x2x192xf32, #tpu.memory_space<vmem>>, vector<1x2x192xf32>
    %9 = vector.shape_cast %8 : vector<1x2x192xf32> to vector<2x192xf32>
    %10 = vector.extract_strided_slice %9 {offsets = [0, 0], sizes = [2, 64], strides = [1, 1]} : vector<2x192xf32> to vector<2x64xf32>
    %11 = vector.extract_strided_slice %6 {offsets = [0, 0], sizes = [2, 64], strides = [1, 1]} : vector<2x192xf32> to vector<2x64xf32>
    %12 = arith.addf %10, %11 : vector<2x64xf32>
    %13 = arith.negf %12 : vector<2x64xf32>
    %14 = math.exp %13 : vector<2x64xf32>
    %cst_6 = arith.constant 1.000000e+00 : f32
    %15 = vector.broadcast %cst_6 : f32 to vector<2x64xf32>
    %16 = arith.addf %15, %14 : vector<2x64xf32>
    %17 = arith.divf %15, %16 : vector<2x64xf32>
    %18 = vector.extract_strided_slice %9 {offsets = [0, 64], sizes = [2, 64], strides = [1, 1]} : vector<2x192xf32> to vector<2x64xf32>
    %19 = vector.extract_strided_slice %6 {offsets = [0, 64], sizes = [2, 64], strides = [1, 1]} : vector<2x192xf32> to vector<2x64xf32>
    %20 = arith.addf %18, %19 : vector<2x64xf32>
    %21 = arith.negf %20 : vector<2x64xf32>
    %22 = math.exp %21 : vector<2x64xf32>
    %cst_7 = arith.constant 1.000000e+00 : f32
    %23 = vector.broadcast %cst_7 : f32 to vector<2x64xf32>
    %24 = arith.addf %23, %22 : vector<2x64xf32>
    %25 = arith.divf %23, %24 : vector<2x64xf32>
    %26 = vector.extract_strided_slice %9 {offsets = [0, 128], sizes = [2, 64], strides = [1, 1]} : vector<2x192xf32> to vector<2x64xf32>
    %27 = vector.extract_strided_slice %6 {offsets = [0, 128], sizes = [2, 64], strides = [1, 1]} : vector<2x192xf32> to vector<2x64xf32>
    %28 = arith.addf %27, %3 : vector<2x64xf32>
    %29 = arith.mulf %17, %28 : vector<2x64xf32>
    %30 = arith.addf %26, %29 : vector<2x64xf32>
    %31 = math.tanh %30 : vector<2x64xf32>
    %cst_8 = arith.constant 1.000000e+00 : f32
    %32 = vector.broadcast %cst_8 : f32 to vector<2x64xf32>
    %33 = arith.subf %32, %25 : vector<2x64xf32>
    %34 = arith.mulf %33, %31 : vector<2x64xf32>
    %35 = arith.mulf %25, %4 : vector<2x64xf32>
    %36 = arith.addf %34, %35 : vector<2x64xf32>
    %37 = arith.index_cast %c0_i32 : i32 to index
    %c0_9 = arith.constant 0 : index
    %c0_10 = arith.constant 0 : index
    %38 = vector.load %arg3[%37, %c0_9, %c0_10] : memref<8x2x64xf32, #tpu.memory_space<vmem>>, vector<1x2x64xf32>
    %39 = vector.shape_cast %38 : vector<1x2x64xf32> to vector<2x64xf32>
    %cst_11 = arith.constant 0.000000e+00 : f32
    %40 = vector.broadcast %cst_11 : f32 to vector<2x64xf32>
    %41 = arith.cmpf one, %39, %40 : vector<2x64xf32>
    %cst_12 = arith.constant 0.000000e+00 : f32
    %42 = vector.broadcast %cst_12 : f32 to vector<2x64xf32>
    %43 = arith.select %41, %36, %42 : vector<2x64xi1>, vector<2x64xf32>
    %44 = arith.index_cast %c0_i32 : i32 to index
    %c0_13 = arith.constant 0 : index
    %c0_14 = arith.constant 0 : index
    %45 = vector.load %arg4[%44, %c0_13, %c0_14] : memref<8x2x64xf32, #tpu.memory_space<vmem>>, vector<1x2x64xf32>
    %46 = vector.shape_cast %45 : vector<1x2x64xf32> to vector<2x64xf32>
    %47 = vector.shape_cast %43 : vector<2x64xf32> to vector<1x2x64xf32>
    tpu.vector_store %arg4[%44, %c0_13, %c0_14], %47 {strides = array<i32>} : memref<8x2x64xf32, #tpu.memory_space<vmem>>, vector<1x2x64xf32>,
    %48 = arith.select %41, %36, %4 : vector<2x64xi1>, vector<2x64xf32>
    %c1_i32 = arith.constant 1 : i32
    %49 = arith.truncf %48 : vector<2x64xf32> to vector<2x64xbf16>
    %cst_15 = arith.constant dense<0.000000e+00> : vector<2x192xf32>
    %50 = tpu.matmul %49, %0, %cst_15 {dimension_numbers = #tpu.dot_dimension_numbers<[1], [0], [0], [1], [0, 0, 1, 1], [], []>} : vector<2x64xbf16>, vector<64x192xbf16>, vector<2x192xf32> -> vector<2x192xf32>
    %51 = arith.index_cast %c1_i32 : i32 to index
    %c0_16 = arith.constant 0 : index
    %c0_17 = arith.constant 0 : index
    %52 = vector.load %arg0[%51, %c0_16, %c0_17] : memref<8x2x192xf32, #tpu.memory_space<vmem>>, vector<1x2x192xf32>
    %53 = vector.shape_cast %52 : vector<1x2x192xf32> to vector<2x192xf32>
    %54 = vector.extract_strided_slice %53 {offsets = [0, 0], sizes = [2, 64], strides = [1, 1]} : vector<2x192xf32> to vector<2x64xf32>
    %55 = vector.extract_strided_slice %50 {offsets = [0, 0], sizes = [2, 64], strides = [1, 1]} : vector<2x192xf32> to vector<2x64xf32>
    %56 = arith.addf %54, %55 : vector<2x64xf32>
    %57 = arith.negf %56 : vector<2x64xf32>
    %58 = math.exp %57 : vector<2x64xf32>
    %cst_18 = arith.constant 1.000000e+00 : f32
    %59 = vector.broadcast %cst_18 : f32 to vector<2x64xf32>
    %60 = arith.addf %59, %58 : vector<2x64xf32>
    %61 = arith.divf %59, %60 : vector<2x64xf32>
    %62 = vector.extract_strided_slice %53 {offsets = [0, 64], sizes = [2, 64], strides = [1, 1]} : vector<2x192xf32> to vector<2x64xf32>
    %63 = vector.extract_strided_slice %50 {offsets = [0, 64], sizes = [2, 64], strides = [1, 1]} : vector<2x192xf32> to vector<2x64xf32>
    %64 = arith.addf %62, %63 : vector<2x64xf32>
    %65 = arith.negf %64 : vector<2x64xf32>
    %66 = math.exp %65 : vector<2x64xf32>
    %cst_19 = arith.constant 1.000000e+00 : f32
    %67 = vector.broadcast %cst_19 : f32 to vector<2x64xf32>
    %68 = arith.addf %67, %66 : vector<2x64xf32>
    %69 = arith.divf %67, %68 : vector<2x64xf32>
    %70 = vector.extract_strided_slice %53 {offsets = [0, 128], sizes = [2, 64], strides = [1, 1]} : vector<2x192xf32> to vector<2x64xf32>
    %71 = vector.extract_strided_slice %50 {offsets = [0, 128], sizes = [2, 64], strides = [1, 1]} : vector<2x192xf32> to vector<2x64xf32>
    %72 = arith.addf %71, %3 : vector<2x64xf32>
    %73 = arith.mulf %61, %72 : vector<2x64xf32>
    %74 = arith.addf %70, %73 : vector<2x64xf32>
    %75 = math.tanh %74 : vector<2x64xf32>
    %cst_20 = arith.constant 1.000000e+00 : f32
    %76 = vector.broadcast %cst_20 : f32 to vector<2x64xf32>
    %77 = arith.subf %76, %69 : vector<2x64xf32>
    %78 = arith.mulf %77, %75 : vector<2x64xf32>
    %79 = arith.mulf %69, %48 : vector<2x64xf32>
    %80 = arith.addf %78, %79 : vector<2x64xf32>
    %81 = arith.index_cast %c1_i32 : i32 to index
    %c0_21 = arith.constant 0 : index
    %c0_22 = arith.constant 0 : index
    %82 = vector.load %arg3[%81, %c0_21, %c0_22] : memref<8x2x64xf32, #tpu.memory_space<vmem>>, vector<1x2x64xf32>
    %83 = vector.shape_cast %82 : vector<1x2x64xf32> to vector<2x64xf32>
    %cst_23 = arith.constant 0.000000e+00 : f32
    %84 = vector.broadcast %cst_23 : f32 to vector<2x64xf32>
    %85 = arith.cmpf one, %83, %84 : vector<2x64xf32>
    %cst_24 = arith.constant 0.000000e+00 : f32
    %86 = vector.broadcast %cst_24 : f32 to vector<2x64xf32>
    %87 = arith.select %85, %80, %86 : vector<2x64xi1>, vector<2x64xf32>
    %88 = arith.index_cast %c1_i32 : i32 to index
    %c0_25 = arith.constant 0 : index
    %c0_26 = arith.constant 0 : index
    %89 = vector.load %arg4[%88, %c0_25, %c0_26] : memref<8x2x64xf32, #tpu.memory_space<vmem>>, vector<1x2x64xf32>
    %90 = vector.shape_cast %89 : vector<1x2x64xf32> to vector<2x64xf32>
    %91 = vector.shape_cast %87 : vector<2x64xf32> to vector<1x2x64xf32>
    tpu.vector_store %arg4[%88, %c0_25, %c0_26], %91 {strides = array<i32>} : memref<8x2x64xf32, #tpu.memory_space<vmem>>, vector<1x2x64xf32>,
    %92 = arith.select %85, %80, %48 : vector<2x64xi1>, vector<2x64xf32>
    %c2_i32 = arith.constant 2 : i32
    %93 = arith.truncf %92 : vector<2x64xf32> to vector<2x64xbf16>
    %cst_27 = arith.constant dense<0.000000e+00> : vector<2x192xf32>
    %94 = tpu.matmul %93, %0, %cst_27 {dimension_numbers = #tpu.dot_dimension_numbers<[1], [0], [0], [1], [0, 0, 1, 1], [], []>} : vector<2x64xbf16>, vector<64x192xbf16>, vector<2x192xf32> -> vector<2x192xf32>
    %95 = arith.index_cast %c2_i32 : i32 to index
    %c0_28 = arith.constant 0 : index
    %c0_29 = arith.constant 0 : index
    %96 = vector.load %arg0[%95, %c0_28, %c0_29] : memref<8x2x192xf32, #tpu.memory_space<vmem>>, vector<1x2x192xf32>
    %97 = vector.shape_cast %96 : vector<1x2x192xf32> to vector<2x192xf32>
    %98 = vector.extract_strided_slice %97 {offsets = [0, 0], sizes = [2, 64], strides = [1, 1]} : vector<2x192xf32> to vector<2x64xf32>
    %99 = vector.extract_strided_slice %94 {offsets = [0, 0], sizes = [2, 64], strides = [1, 1]} : vector<2x192xf32> to vector<2x64xf32>
    %100 = arith.addf %98, %99 : vector<2x64xf32>
    %101 = arith.negf %100 : vector<2x64xf32>
    %102 = math.exp %101 : vector<2x64xf32>
    %cst_30 = arith.constant 1.000000e+00 : f32
    %103 = vector.broadcast %cst_30 : f32 to vector<2x64xf32>
    %104 = arith.addf %103, %102 : vector<2x64xf32>
    %105 = arith.divf %103, %104 : vector<2x64xf32>
    %106 = vector.extract_strided_slice %97 {offsets = [0, 64], sizes = [2, 64], strides = [1, 1]} : vector<2x192xf32> to vector<2x64xf32>
    %107 = vector.extract_strided_slice %94 {offsets = [0, 64], sizes = [2, 64], strides = [1, 1]} : vector<2x192xf32> to vector<2x64xf32>
    %108 = arith.addf %106, %107 : vector<2x64xf32>
    %109 = arith.negf %108 : vector<2x64xf32>
    %110 = math.exp %109 : vector<2x64xf32>
    %cst_31 = arith.constant 1.000000e+00 : f32
    %111 = vector.broadcast %cst_31 : f32 to vector<2x64xf32>
    %112 = arith.addf %111, %110 : vector<2x64xf32>
    %113 = arith.divf %111, %112 : vector<2x64xf32>
    %114 = vector.extract_strided_slice %97 {offsets = [0, 128], sizes = [2, 64], strides = [1, 1]} : vector<2x192xf32> to vector<2x64xf32>
    %115 = vector.extract_strided_slice %94 {offsets = [0, 128], sizes = [2, 64], strides = [1, 1]} : vector<2x192xf32> to vector<2x64xf32>
    %116 = arith.addf %115, %3 : vector<2x64xf32>
    %117 = arith.mulf %105, %116 : vector<2x64xf32>
    %118 = arith.addf %114, %117 : vector<2x64xf32>
    %119 = math.tanh %118 : vector<2x64xf32>
    %cst_32 = arith.constant 1.000000e+00 : f32
    %120 = vector.broadcast %cst_32 : f32 to vector<2x64xf32>
    %121 = arith.subf %120, %113 : vector<2x64xf32>
    %122 = arith.mulf %121, %119 : vector<2x64xf32>
    %123 = arith.mulf %113, %92 : vector<2x64xf32>
    %124 = arith.addf %122, %123 : vector<2x64xf32>
    %125 = arith.index_cast %c2_i32 : i32 to index
    %c0_33 = arith.constant 0 : index
    %c0_34 = arith.constant 0 : index
    %126 = vector.load %arg3[%125, %c0_33, %c0_34] : memref<8x2x64xf32, #tpu.memory_space<vmem>>, vector<1x2x64xf32>
    %127 = vector.shape_cast %126 : vector<1x2x64xf32> to vector<2x64xf32>
    %cst_35 = arith.constant 0.000000e+00 : f32
    %128 = vector.broadcast %cst_35 : f32 to vector<2x64xf32>
    %129 = arith.cmpf one, %127, %128 : vector<2x64xf32>
    %cst_36 = arith.constant 0.000000e+00 : f32
    %130 = vector.broadcast %cst_36 : f32 to vector<2x64xf32>
    %131 = arith.select %129, %124, %130 : vector<2x64xi1>, vector<2x64xf32>
    %132 = arith.index_cast %c2_i32 : i32 to index
    %c0_37 = arith.constant 0 : index
    %c0_38 = arith.constant 0 : index
    %133 = vector.load %arg4[%132, %c0_37, %c0_38] : memref<8x2x64xf32, #tpu.memory_space<vmem>>, vector<1x2x64xf32>
    %134 = vector.shape_cast %133 : vector<1x2x64xf32> to vector<2x64xf32>
    %135 = vector.shape_cast %131 : vector<2x64xf32> to vector<1x2x64xf32>
    tpu.vector_store %arg4[%132, %c0_37, %c0_38], %135 {strides = array<i32>} : memref<8x2x64xf32, #tpu.memory_space<vmem>>, vector<1x2x64xf32>,
    %136 = arith.select %129, %124, %92 : vector<2x64xi1>, vector<2x64xf32>
    %c3_i32 = arith.constant 3 : i32
    %137 = arith.truncf %136 : vector<2x64xf32> to vector<2x64xbf16>
    %cst_39 = arith.constant dense<0.000000e+00> : vector<2x192xf32>
    %138 = tpu.matmul %137, %0, %cst_39 {dimension_numbers = #tpu.dot_dimension_numbers<[1], [0], [0], [1], [0, 0, 1, 1], [], []>} : vector<2x64xbf16>, vector<64x192xbf16>, vector<2x192xf32> -> vector<2x192xf32>
    %139 = arith.index_cast %c3_i32 : i32 to index
    %c0_40 = arith.constant 0 : index
    %c0_41 = arith.constant 0 : index
    %140 = vector.load %arg0[%139, %c0_40, %c0_41] : memref<8x2x192xf32, #tpu.memory_space<vmem>>, vector<1x2x192xf32>
    %141 = vector.shape_cast %140 : vector<1x2x192xf32> to vector<2x192xf32>
    %142 = vector.extract_strided_slice %141 {offsets = [0, 0], sizes = [2, 64], strides = [1, 1]} : vector<2x192xf32> to vector<2x64xf32>
    %143 = vector.extract_strided_slice %138 {offsets = [0, 0], sizes = [2, 64], strides = [1, 1]} : vector<2x192xf32> to vector<2x64xf32>
    %144 = arith.addf %142, %143 : vector<2x64xf32>
    %145 = arith.negf %144 : vector<2x64xf32>
    %146 = math.exp %145 : vector<2x64xf32>
    %cst_42 = arith.constant 1.000000e+00 : f32
    %147 = vector.broadcast %cst_42 : f32 to vector<2x64xf32>
    %148 = arith.addf %147, %146 : vector<2x64xf32>
    %149 = arith.divf %147, %148 : vector<2x64xf32>
    %150 = vector.extract_strided_slice %141 {offsets = [0, 64], sizes = [2, 64], strides = [1, 1]} : vector<2x192xf32> to vector<2x64xf32>
    %151 = vector.extract_strided_slice %138 {offsets = [0, 64], sizes = [2, 64], strides = [1, 1]} : vector<2x192xf32> to vector<2x64xf32>
    %152 = arith.addf %150, %151 : vector<2x64xf32>
    %153 = arith.negf %152 : vector<2x64xf32>
    %154 = math.exp %153 : vector<2x64xf32>
    %cst_43 = arith.constant 1.000000e+00 : f32
    %155 = vector.broadcast %cst_43 : f32 to vector<2x64xf32>
    %156 = arith.addf %155, %154 : vector<2x64xf32>
    %157 = arith.divf %155, %156 : vector<2x64xf32>
    %158 = vector.extract_strided_slice %141 {offsets = [0, 128], sizes = [2, 64], strides = [1, 1]} : vector<2x192xf32> to vector<2x64xf32>
    %159 = vector.extract_strided_slice %138 {offsets = [0, 128], sizes = [2, 64], strides = [1, 1]} : vector<2x192xf32> to vector<2x64xf32>
    %160 = arith.addf %159, %3 : vector<2x64xf32>
    %161 = arith.mulf %149, %160 : vector<2x64xf32>
    %162 = arith.addf %158, %161 : vector<2x64xf32>
    %163 = math.tanh %162 : vector<2x64xf32>
    %cst_44 = arith.constant 1.000000e+00 : f32
    %164 = vector.broadcast %cst_44 : f32 to vector<2x64xf32>
    %165 = arith.subf %164, %157 : vector<2x64xf32>
    %166 = arith.mulf %165, %163 : vector<2x64xf32>
    %167 = arith.mulf %157, %136 : vector<2x64xf32>
    %168 = arith.addf %166, %167 : vector<2x64xf32>
    %169 = arith.index_cast %c3_i32 : i32 to index
    %c0_45 = arith.constant 0 : index
    %c0_46 = arith.constant 0 : index
    %170 = vector.load %arg3[%169, %c0_45, %c0_46] : memref<8x2x64xf32, #tpu.memory_space<vmem>>, vector<1x2x64xf32>
    %171 = vector.shape_cast %170 : vector<1x2x64xf32> to vector<2x64xf32>
    %cst_47 = arith.constant 0.000000e+00 : f32
    %172 = vector.broadcast %cst_47 : f32 to vector<2x64xf32>
    %173 = arith.cmpf one, %171, %172 : vector<2x64xf32>
    %cst_48 = arith.constant 0.000000e+00 : f32
    %174 = vector.broadcast %cst_48 : f32 to vector<2x64xf32>
    %175 = arith.select %173, %168, %174 : vector<2x64xi1>, vector<2x64xf32>
    %176 = arith.index_cast %c3_i32 : i32 to index
    %c0_49 = arith.constant 0 : index
    %c0_50 = arith.constant 0 : index
    %177 = vector.load %arg4[%176, %c0_49, %c0_50] : memref<8x2x64xf32, #tpu.memory_space<vmem>>, vector<1x2x64xf32>
    %178 = vector.shape_cast %177 : vector<1x2x64xf32> to vector<2x64xf32>
    %179 = vector.shape_cast %175 : vector<2x64xf32> to vector<1x2x64xf32>
    tpu.vector_store %arg4[%176, %c0_49, %c0_50], %179 {strides = array<i32>} : memref<8x2x64xf32, #tpu.memory_space<vmem>>, vector<1x2x64xf32>,
    %180 = arith.select %173, %168, %136 : vector<2x64xi1>, vector<2x64xf32>
    %c4_i32 = arith.constant 4 : i32
    %181 = arith.truncf %180 : vector<2x64xf32> to vector<2x64xbf16>
    %cst_51 = arith.constant dense<0.000000e+00> : vector<2x192xf32>
    %182 = tpu.matmul %181, %0, %cst_51 {dimension_numbers = #tpu.dot_dimension_numbers<[1], [0], [0], [1], [0, 0, 1, 1], [], []>} : vector<2x64xbf16>, vector<64x192xbf16>, vector<2x192xf32> -> vector<2x192xf32>
    %183 = arith.index_cast %c4_i32 : i32 to index
    %c0_52 = arith.constant 0 : index
    %c0_53 = arith.constant 0 : index
    %184 = vector.load %arg0[%183, %c0_52, %c0_53] : memref<8x2x192xf32, #tpu.memory_space<vmem>>, vector<1x2x192xf32>
    %185 = vector.shape_cast %184 : vector<1x2x192xf32> to vector<2x192xf32>
    %186 = vector.extract_strided_slice %185 {offsets = [0, 0], sizes = [2, 64], strides = [1, 1]} : vector<2x192xf32> to vector<2x64xf32>
    %187 = vector.extract_strided_slice %182 {offsets = [0, 0], sizes = [2, 64], strides = [1, 1]} : vector<2x192xf32> to vector<2x64xf32>
    %188 = arith.addf %186, %187 : vector<2x64xf32>
    %189 = arith.negf %188 : vector<2x64xf32>
    %190 = math.exp %189 : vector<2x64xf32>
    %cst_54 = arith.constant 1.000000e+00 : f32
    %191 = vector.broadcast %cst_54 : f32 to vector<2x64xf32>
    %192 = arith.addf %191, %190 : vector<2x64xf32>
    %193 = arith.divf %191, %192 : vector<2x64xf32>
    %194 = vector.extract_strided_slice %185 {offsets = [0, 64], sizes = [2, 64], strides = [1, 1]} : vector<2x192xf32> to vector<2x64xf32>
    %195 = vector.extract_strided_slice %182 {offsets = [0, 64], sizes = [2, 64], strides = [1, 1]} : vector<2x192xf32> to vector<2x64xf32>
    %196 = arith.addf %194, %195 : vector<2x64xf32>
    %197 = arith.negf %196 : vector<2x64xf32>
    %198 = math.exp %197 : vector<2x64xf32>
    %cst_55 = arith.constant 1.000000e+00 : f32
    %199 = vector.broadcast %cst_55 : f32 to vector<2x64xf32>
    %200 = arith.addf %199, %198 : vector<2x64xf32>
    %201 = arith.divf %199, %200 : vector<2x64xf32>
    %202 = vector.extract_strided_slice %185 {offsets = [0, 128], sizes = [2, 64], strides = [1, 1]} : vector<2x192xf32> to vector<2x64xf32>
    %203 = vector.extract_strided_slice %182 {offsets = [0, 128], sizes = [2, 64], strides = [1, 1]} : vector<2x192xf32> to vector<2x64xf32>
    %204 = arith.addf %203, %3 : vector<2x64xf32>
    %205 = arith.mulf %193, %204 : vector<2x64xf32>
    %206 = arith.addf %202, %205 : vector<2x64xf32>
    %207 = math.tanh %206 : vector<2x64xf32>
    %cst_56 = arith.constant 1.000000e+00 : f32
    %208 = vector.broadcast %cst_56 : f32 to vector<2x64xf32>
    %209 = arith.subf %208, %201 : vector<2x64xf32>
    %210 = arith.mulf %209, %207 : vector<2x64xf32>
    %211 = arith.mulf %201, %180 : vector<2x64xf32>
    %212 = arith.addf %210, %211 : vector<2x64xf32>
    %213 = arith.index_cast %c4_i32 : i32 to index
    %c0_57 = arith.constant 0 : index
    %c0_58 = arith.constant 0 : index
    %214 = vector.load %arg3[%213, %c0_57, %c0_58] : memref<8x2x64xf32, #tpu.memory_space<vmem>>, vector<1x2x64xf32>
    %215 = vector.shape_cast %214 : vector<1x2x64xf32> to vector<2x64xf32>
    %cst_59 = arith.constant 0.000000e+00 : f32
    %216 = vector.broadcast %cst_59 : f32 to vector<2x64xf32>
    %217 = arith.cmpf one, %215, %216 : vector<2x64xf32>
    %cst_60 = arith.constant 0.000000e+00 : f32
    %218 = vector.broadcast %cst_60 : f32 to vector<2x64xf32>
    %219 = arith.select %217, %212, %218 : vector<2x64xi1>, vector<2x64xf32>
    %220 = arith.index_cast %c4_i32 : i32 to index
    %c0_61 = arith.constant 0 : index
    %c0_62 = arith.constant 0 : index
    %221 = vector.load %arg4[%220, %c0_61, %c0_62] : memref<8x2x64xf32, #tpu.memory_space<vmem>>, vector<1x2x64xf32>
    %222 = vector.shape_cast %221 : vector<1x2x64xf32> to vector<2x64xf32>
    %223 = vector.shape_cast %219 : vector<2x64xf32> to vector<1x2x64xf32>
    tpu.vector_store %arg4[%220, %c0_61, %c0_62], %223 {strides = array<i32>} : memref<8x2x64xf32, #tpu.memory_space<vmem>>, vector<1x2x64xf32>,
    %224 = arith.select %217, %212, %180 : vector<2x64xi1>, vector<2x64xf32>
    %c5_i32 = arith.constant 5 : i32
    %225 = arith.truncf %224 : vector<2x64xf32> to vector<2x64xbf16>
    %cst_63 = arith.constant dense<0.000000e+00> : vector<2x192xf32>
    %226 = tpu.matmul %225, %0, %cst_63 {dimension_numbers = #tpu.dot_dimension_numbers<[1], [0], [0], [1], [0, 0, 1, 1], [], []>} : vector<2x64xbf16>, vector<64x192xbf16>, vector<2x192xf32> -> vector<2x192xf32>
    %227 = arith.index_cast %c5_i32 : i32 to index
    %c0_64 = arith.constant 0 : index
    %c0_65 = arith.constant 0 : index
    %228 = vector.load %arg0[%227, %c0_64, %c0_65] : memref<8x2x192xf32, #tpu.memory_space<vmem>>, vector<1x2x192xf32>
    %229 = vector.shape_cast %228 : vector<1x2x192xf32> to vector<2x192xf32>
    %230 = vector.extract_strided_slice %229 {offsets = [0, 0], sizes = [2, 64], strides = [1, 1]} : vector<2x192xf32> to vector<2x64xf32>
    %231 = vector.extract_strided_slice %226 {offsets = [0, 0], sizes = [2, 64], strides = [1, 1]} : vector<2x192xf32> to vector<2x64xf32>
    %232 = arith.addf %230, %231 : vector<2x64xf32>
    %233 = arith.negf %232 : vector<2x64xf32>
    %234 = math.exp %233 : vector<2x64xf32>
    %cst_66 = arith.constant 1.000000e+00 : f32
    %235 = vector.broadcast %cst_66 : f32 to vector<2x64xf32>
    %236 = arith.addf %235, %234 : vector<2x64xf32>
    %237 = arith.divf %235, %236 : vector<2x64xf32>
    %238 = vector.extract_strided_slice %229 {offsets = [0, 64], sizes = [2, 64], strides = [1, 1]} : vector<2x192xf32> to vector<2x64xf32>
    %239 = vector.extract_strided_slice %226 {offsets = [0, 64], sizes = [2, 64], strides = [1, 1]} : vector<2x192xf32> to vector<2x64xf32>
    %240 = arith.addf %238, %239 : vector<2x64xf32>
    %241 = arith.negf %240 : vector<2x64xf32>
    %242 = math.exp %241 : vector<2x64xf32>
    %cst_67 = arith.constant 1.000000e+00 : f32
    %243 = vector.broadcast %cst_67 : f32 to vector<2x64xf32>
    %244 = arith.addf %243, %242 : vector<2x64xf32>
    %245 = arith.divf %243, %244 : vector<2x64xf32>
    %246 = vector.extract_strided_slice %229 {offsets = [0, 128], sizes = [2, 64], strides = [1, 1]} : vector<2x192xf32> to vector<2x64xf32>
    %247 = vector.extract_strided_slice %226 {offsets = [0, 128], sizes = [2, 64], strides = [1, 1]} : vector<2x192xf32> to vector<2x64xf32>
    %248 = arith.addf %247, %3 : vector<2x64xf32>
    %249 = arith.mulf %237, %248 : vector<2x64xf32>
    %250 = arith.addf %246, %249 : vector<2x64xf32>
    %251 = math.tanh %250 : vector<2x64xf32>
    %cst_68 = arith.constant 1.000000e+00 : f32
    %252 = vector.broadcast %cst_68 : f32 to vector<2x64xf32>
    %253 = arith.subf %252, %245 : vector<2x64xf32>
    %254 = arith.mulf %253, %251 : vector<2x64xf32>
    %255 = arith.mulf %245, %224 : vector<2x64xf32>
    %256 = arith.addf %254, %255 : vector<2x64xf32>
    %257 = arith.index_cast %c5_i32 : i32 to index
    %c0_69 = arith.constant 0 : index
    %c0_70 = arith.constant 0 : index
    %258 = vector.load %arg3[%257, %c0_69, %c0_70] : memref<8x2x64xf32, #tpu.memory_space<vmem>>, vector<1x2x64xf32>
    %259 = vector.shape_cast %258 : vector<1x2x64xf32> to vector<2x64xf32>
    %cst_71 = arith.constant 0.000000e+00 : f32
    %260 = vector.broadcast %cst_71 : f32 to vector<2x64xf32>
    %261 = arith.cmpf one, %259, %260 : vector<2x64xf32>
    %cst_72 = arith.constant 0.000000e+00 : f32
    %262 = vector.broadcast %cst_72 : f32 to vector<2x64xf32>
    %263 = arith.select %261, %256, %262 : vector<2x64xi1>, vector<2x64xf32>
    %264 = arith.index_cast %c5_i32 : i32 to index
    %c0_73 = arith.constant 0 : index
    %c0_74 = arith.constant 0 : index
    %265 = vector.load %arg4[%264, %c0_73, %c0_74] : memref<8x2x64xf32, #tpu.memory_space<vmem>>, vector<1x2x64xf32>
    %266 = vector.shape_cast %265 : vector<1x2x64xf32> to vector<2x64xf32>
    %267 = vector.shape_cast %263 : vector<2x64xf32> to vector<1x2x64xf32>
    tpu.vector_store %arg4[%264, %c0_73, %c0_74], %267 {strides = array<i32>} : memref<8x2x64xf32, #tpu.memory_space<vmem>>, vector<1x2x64xf32>,
    %268 = arith.select %261, %256, %224 : vector<2x64xi1>, vector<2x64xf32>
    %c6_i32 = arith.constant 6 : i32
    %269 = arith.truncf %268 : vector<2x64xf32> to vector<2x64xbf16>
    %cst_75 = arith.constant dense<0.000000e+00> : vector<2x192xf32>
    %270 = tpu.matmul %269, %0, %cst_75 {dimension_numbers = #tpu.dot_dimension_numbers<[1], [0], [0], [1], [0, 0, 1, 1], [], []>} : vector<2x64xbf16>, vector<64x192xbf16>, vector<2x192xf32> -> vector<2x192xf32>
    %271 = arith.index_cast %c6_i32 : i32 to index
    %c0_76 = arith.constant 0 : index
    %c0_77 = arith.constant 0 : index
    %272 = vector.load %arg0[%271, %c0_76, %c0_77] : memref<8x2x192xf32, #tpu.memory_space<vmem>>, vector<1x2x192xf32>
    %273 = vector.shape_cast %272 : vector<1x2x192xf32> to vector<2x192xf32>
    %274 = vector.extract_strided_slice %273 {offsets = [0, 0], sizes = [2, 64], strides = [1, 1]} : vector<2x192xf32> to vector<2x64xf32>
    %275 = vector.extract_strided_slice %270 {offsets = [0, 0], sizes = [2, 64], strides = [1, 1]} : vector<2x192xf32> to vector<2x64xf32>
    %276 = arith.addf %274, %275 : vector<2x64xf32>
    %277 = arith.negf %276 : vector<2x64xf32>
    %278 = math.exp %277 : vector<2x64xf32>
    %cst_78 = arith.constant 1.000000e+00 : f32
    %279 = vector.broadcast %cst_78 : f32 to vector<2x64xf32>
    %280 = arith.addf %279, %278 : vector<2x64xf32>
    %281 = arith.divf %279, %280 : vector<2x64xf32>
    %282 = vector.extract_strided_slice %273 {offsets = [0, 64], sizes = [2, 64], strides = [1, 1]} : vector<2x192xf32> to vector<2x64xf32>
    %283 = vector.extract_strided_slice %270 {offsets = [0, 64], sizes = [2, 64], strides = [1, 1]} : vector<2x192xf32> to vector<2x64xf32>
    %284 = arith.addf %282, %283 : vector<2x64xf32>
    %285 = arith.negf %284 : vector<2x64xf32>
    %286 = math.exp %285 : vector<2x64xf32>
    %cst_79 = arith.constant 1.000000e+00 : f32
    %287 = vector.broadcast %cst_79 : f32 to vector<2x64xf32>
    %288 = arith.addf %287, %286 : vector<2x64xf32>
    %289 = arith.divf %287, %288 : vector<2x64xf32>
    %290 = vector.extract_strided_slice %273 {offsets = [0, 128], sizes = [2, 64], strides = [1, 1]} : vector<2x192xf32> to vector<2x64xf32>
    %291 = vector.extract_strided_slice %270 {offsets = [0, 128], sizes = [2, 64], strides = [1, 1]} : vector<2x192xf32> to vector<2x64xf32>
    %292 = arith.addf %291, %3 : vector<2x64xf32>
    %293 = arith.mulf %281, %292 : vector<2x64xf32>
    %294 = arith.addf %290, %293 : vector<2x64xf32>
    %295 = math.tanh %294 : vector<2x64xf32>
    %cst_80 = arith.constant 1.000000e+00 : f32
    %296 = vector.broadcast %cst_80 : f32 to vector<2x64xf32>
    %297 = arith.subf %296, %289 : vector<2x64xf32>
    %298 = arith.mulf %297, %295 : vector<2x64xf32>
    %299 = arith.mulf %289, %268 : vector<2x64xf32>
    %300 = arith.addf %298, %299 : vector<2x64xf32>
    %301 = arith.index_cast %c6_i32 : i32 to index
    %c0_81 = arith.constant 0 : index
    %c0_82 = arith.constant 0 : index
    %302 = vector.load %arg3[%301, %c0_81, %c0_82] : memref<8x2x64xf32, #tpu.memory_space<vmem>>, vector<1x2x64xf32>
    %303 = vector.shape_cast %302 : vector<1x2x64xf32> to vector<2x64xf32>
    %cst_83 = arith.constant 0.000000e+00 : f32
    %304 = vector.broadcast %cst_83 : f32 to vector<2x64xf32>
    %305 = arith.cmpf one, %303, %304 : vector<2x64xf32>
    %cst_84 = arith.constant 0.000000e+00 : f32
    %306 = vector.broadcast %cst_84 : f32 to vector<2x64xf32>
    %307 = arith.select %305, %300, %306 : vector<2x64xi1>, vector<2x64xf32>
    %308 = arith.index_cast %c6_i32 : i32 to index
    %c0_85 = arith.constant 0 : index
    %c0_86 = arith.constant 0 : index
    %309 = vector.load %arg4[%308, %c0_85, %c0_86] : memref<8x2x64xf32, #tpu.memory_space<vmem>>, vector<1x2x64xf32>
    %310 = vector.shape_cast %309 : vector<1x2x64xf32> to vector<2x64xf32>
    %311 = vector.shape_cast %307 : vector<2x64xf32> to vector<1x2x64xf32>
    tpu.vector_store %arg4[%308, %c0_85, %c0_86], %311 {strides = array<i32>} : memref<8x2x64xf32, #tpu.memory_space<vmem>>, vector<1x2x64xf32>,
    %312 = arith.select %305, %300, %268 : vector<2x64xi1>, vector<2x64xf32>
    %c7_i32 = arith.constant 7 : i32
    %313 = arith.truncf %312 : vector<2x64xf32> to vector<2x64xbf16>
    %cst_87 = arith.constant dense<0.000000e+00> : vector<2x192xf32>
    %314 = tpu.matmul %313, %0, %cst_87 {dimension_numbers = #tpu.dot_dimension_numbers<[1], [0], [0], [1], [0, 0, 1, 1], [], []>} : vector<2x64xbf16>, vector<64x192xbf16>, vector<2x192xf32> -> vector<2x192xf32>
    %315 = arith.index_cast %c7_i32 : i32 to index
    %c0_88 = arith.constant 0 : index
    %c0_89 = arith.constant 0 : index
    %316 = vector.load %arg0[%315, %c0_88, %c0_89] : memref<8x2x192xf32, #tpu.memory_space<vmem>>, vector<1x2x192xf32>
    %317 = vector.shape_cast %316 : vector<1x2x192xf32> to vector<2x192xf32>
    %318 = vector.extract_strided_slice %317 {offsets = [0, 0], sizes = [2, 64], strides = [1, 1]} : vector<2x192xf32> to vector<2x64xf32>
    %319 = vector.extract_strided_slice %314 {offsets = [0, 0], sizes = [2, 64], strides = [1, 1]} : vector<2x192xf32> to vector<2x64xf32>
    %320 = arith.addf %318, %319 : vector<2x64xf32>
    %321 = arith.negf %320 : vector<2x64xf32>
    %322 = math.exp %321 : vector<2x64xf32>
    %cst_90 = arith.constant 1.000000e+00 : f32
    %323 = vector.broadcast %cst_90 : f32 to vector<2x64xf32>
    %324 = arith.addf %323, %322 : vector<2x64xf32>
    %325 = arith.divf %323, %324 : vector<2x64xf32>
    %326 = vector.extract_strided_slice %317 {offsets = [0, 64], sizes = [2, 64], strides = [1, 1]} : vector<2x192xf32> to vector<2x64xf32>
    %327 = vector.extract_strided_slice %314 {offsets = [0, 64], sizes = [2, 64], strides = [1, 1]} : vector<2x192xf32> to vector<2x64xf32>
    %328 = arith.addf %326, %327 : vector<2x64xf32>
    %329 = arith.negf %328 : vector<2x64xf32>
    %330 = math.exp %329 : vector<2x64xf32>
    %cst_91 = arith.constant 1.000000e+00 : f32
    %331 = vector.broadcast %cst_91 : f32 to vector<2x64xf32>
    %332 = arith.addf %331, %330 : vector<2x64xf32>
    %333 = arith.divf %331, %332 : vector<2x64xf32>
    %334 = vector.extract_strided_slice %317 {offsets = [0, 128], sizes = [2, 64], strides = [1, 1]} : vector<2x192xf32> to vector<2x64xf32>
    %335 = vector.extract_strided_slice %314 {offsets = [0, 128], sizes = [2, 64], strides = [1, 1]} : vector<2x192xf32> to vector<2x64xf32>
    %336 = arith.addf %335, %3 : vector<2x64xf32>
    %337 = arith.mulf %325, %336 : vector<2x64xf32>
    %338 = arith.addf %334, %337 : vector<2x64xf32>
    %339 = math.tanh %338 : vector<2x64xf32>
    %cst_92 = arith.constant 1.000000e+00 : f32
    %340 = vector.broadcast %cst_92 : f32 to vector<2x64xf32>
    %341 = arith.subf %340, %333 : vector<2x64xf32>
    %342 = arith.mulf %341, %339 : vector<2x64xf32>
    %343 = arith.mulf %333, %312 : vector<2x64xf32>
    %344 = arith.addf %342, %343 : vector<2x64xf32>
    %345 = arith.index_cast %c7_i32 : i32 to index
    %c0_93 = arith.constant 0 : index
    %c0_94 = arith.constant 0 : index
    %346 = vector.load %arg3[%345, %c0_93, %c0_94] : memref<8x2x64xf32, #tpu.memory_space<vmem>>, vector<1x2x64xf32>
    %347 = vector.shape_cast %346 : vector<1x2x64xf32> to vector<2x64xf32>
    %cst_95 = arith.constant 0.000000e+00 : f32
    %348 = vector.broadcast %cst_95 : f32 to vector<2x64xf32>
    %349 = arith.cmpf one, %347, %348 : vector<2x64xf32>
    %cst_96 = arith.constant 0.000000e+00 : f32
    %350 = vector.broadcast %cst_96 : f32 to vector<2x64xf32>
    %351 = arith.select %349, %344, %350 : vector<2x64xi1>, vector<2x64xf32>
    %352 = arith.index_cast %c7_i32 : i32 to index
    %c0_97 = arith.constant 0 : index
    %c0_98 = arith.constant 0 : index
    %353 = vector.load %arg4[%352, %c0_97, %c0_98] : memref<8x2x64xf32, #tpu.memory_space<vmem>>, vector<1x2x64xf32>
    %354 = vector.shape_cast %353 : vector<1x2x64xf32> to vector<2x64xf32>
    %355 = vector.shape_cast %351 : vector<2x64xf32> to vector<1x2x64xf32>
    tpu.vector_store %arg4[%352, %c0_97, %c0_98], %355 {strides = array<i32>} : memref<8x2x64xf32, #tpu.memory_space<vmem>>, vector<1x2x64xf32>,
    %356 = arith.select %349, %344, %312 : vector<2x64xi1>, vector<2x64xf32>
    %c8_i32 = arith.constant 8 : i32
    %c0_99 = arith.constant 0 : index
    %c0_100 = arith.constant 0 : index
    %357 = vector.load %arg5[%c0_99, %c0_100] : memref<2x64xf32, #tpu.memory_space<vmem>>, vector<2x64xf32>
    tpu.vector_store %arg5[%c0_99, %c0_100], %356 {strides = array<i32>} : memref<2x64xf32, #tpu.memory_space<vmem>>, vector<2x64xf32>,
    return
  }
}

</mosaic_0001>

<llo_original>
// kernel: tpu_custom_call.1
$region0: #{tpu_custom_call.1}
  #allocation0 [shape = 'u32[]', space=smem, size = 0x4, offset = 0x4, fixed_abs, tag = 'smem constant byte address 0x4 - core index']
  #allocation1 [shape = 'u32[72,128]{1,0:T(1,128)}', space=vmem, size = 0x9000, scoped, tag = 'internal scratch']
  %s0 = inlined_call_operand.hbm [shape: f32[8,2,192], index: 0, kind: input, shape index: {}]
  %s1 = inlined_call_operand.hbm [shape: bf16[64,192], index: 1, kind: input, shape index: {}]
  %s2 = inlined_call_operand.vmem [shape: f32[1,64], index: 2, kind: input, shape index: {}]
  %s3 = inlined_call_operand.hbm [shape: f32[8,2,64], index: 3, kind: input, shape index: {}]
  %s4 = inlined_call_operand.hbm [shape: f32[8,2,64], index: 4, kind: output, shape index: {0}]
  %s5 = inlined_call_operand.hbm [shape: f32[2,64], index: 5, kind: output, shape index: {1}]
  %6 = xla_tuple %s4, %s5
  %s7 = sld [smem:[#allocation0]]
  $region46: #{tpu_custom_call.1} parent=0
    _
  %s9 = ssub.s32 1, %s7
  %s10 = scalar_select 0, %s9, %s7
  $region1: #{tpu_custom_call.1} parent=0
    #allocation2 [shape = 'u8[16384]{0}', space=vmem, size = 0x4000, scoped, tag = 'input window, operand 0, single buffered']
    #allocation3 [shape = 's32[1]{0}', space=sflag, size = 0x4, scoped, tag = 'scoped memory for tpu_custom_call.1']
    #allocation4 [shape = 's32[1]{0}', space=sflag, size = 0x4, scoped, tag = 'scoped memory for tpu_custom_call.1']
    #allocation5 [shape = 'u8[32768]{0}', space=vmem, size = 0x8000, scoped, tag = 'input window, operand 1, single buffered']
    #allocation6 [shape = 's32[1]{0}', space=sflag, size = 0x4, scoped, tag = 'scoped memory for tpu_custom_call.1']
    #allocation7 [shape = 'u8[8192]{0}', space=vmem, size = 0x2000, scoped, tag = 'input window, operand 3, single buffered']
    #allocation8 [shape = 'u8[8192]{0}', space=vmem, size = 0x2000, scoped, tag = 'output window, operand 0, single buffered']
    #allocation9 [shape = 'u8[1024]{0}', space=vmem, size = 0x400, scoped, tag = 'output window, operand 1, single buffered']
    #allocation10 [shape = 's32[1]{0}', space=sflag, size = 0x4, scoped, tag = 'scoped memory for tpu_custom_call.1']
    %11 = vsyncpa [#allocation3], 0
    %12 = vsyncpa [#allocation6], 0
    %13 = vsyncpa [#allocation4], 0
    %14 = vsyncpa [#allocation10], 0
    // Predicated region
    $region2: #{tpu_custom_call.1} parent=1 // pred_check
      _
    $region3: #{tpu_custom_call.1} parent=1 // pred_check_branch
      %16 = sbr.rel (0) target = $region5
    $region4: #{tpu_custom_call.1} parent=1 // pred_region
      %18 = vsyncadd [#allocation3], 0
      %s19 = sshll.u32 %s0, 4
      %s20 = int_to_ptr.hbm [resolvable:$true] %s19
      %s21 = sshll.u32 [#allocation2], 4
      %s22 = int_to_ptr.vmem [resolvable:$true] %s21
      %27 = dma.hbm_to_vmem [thread:$0]  %s20, 512, %s22, [#allocation3], 64, 64, 4
    $region5: #{tpu_custom_call.1} parent=1 // pred_fallthru
      _
    // Predicated region
    $region6: #{tpu_custom_call.1} parent=1 // pred_check
      _
    $region7: #{tpu_custom_call.1} parent=1 // pred_check_branch
      %29 = sbr.rel (0) target = $region9
    $region8: #{tpu_custom_call.1} parent=1 // pred_region
      %31 = vsyncadd [#allocation6], 0
      %s32 = sshll.u32 %s1, 4
      %s33 = int_to_ptr.hbm [resolvable:$true] %s32
      %s34 = sshll.u32 [#allocation5], 4
      %s35 = int_to_ptr.vmem [resolvable:$true] %s34
      %40 = dma.hbm_to_vmem [thread:$0]  %s33, 1024, %s35, [#allocation6], 128, 128, 8
    $region9: #{tpu_custom_call.1} parent=1 // pred_fallthru
      _
    // Predicated region
    $region10: #{tpu_custom_call.1} parent=1 // pred_check
      _
    $region11: #{tpu_custom_call.1} parent=1 // pred_check_branch
      %42 = sbr.rel (0) target = $region13
    $region12: #{tpu_custom_call.1} parent=1 // pred_region
      _
    $region13: #{tpu_custom_call.1} parent=1 // pred_fallthru
      _
    // Predicated region
    $region14: #{tpu_custom_call.1} parent=1 // pred_check
      _
    $region15: #{tpu_custom_call.1} parent=1 // pred_check_branch
      %44 = sbr.rel (0) target = $region17
    $region16: #{tpu_custom_call.1} parent=1 // pred_region
      %46 = vsyncadd [#allocation6], 0
      %s47 = sshll.u32 %s3, 4
      %s48 = int_to_ptr.hbm [resolvable:$true] %s47
      %s49 = sshll.u32 [#allocation7], 4
      %s50 = int_to_ptr.vmem [resolvable:$true] %s49
      %55 = dma.hbm_to_vmem [thread:$0]  %s48, 256, %s50, [#allocation6], 32, 32, 2
    $region17: #{tpu_custom_call.1} parent=1 // pred_fallthru
      _
    // Predicated region
    $region18: #{tpu_custom_call.1} parent=1 // pred_check
      _
    $region19: #{tpu_custom_call.1} parent=1 // pred_check_branch
      %57 = sbr.rel (0) target = $region21
    $region20: #{tpu_custom_call.1} parent=1 // pred_region
      %59 = dma.done [#allocation3], 512
    $region21: #{tpu_custom_call.1} parent=1 // pred_fallthru
      _
    // Predicated region
    $region22: #{tpu_custom_call.1} parent=1 // pred_check
      _
    $region23: #{tpu_custom_call.1} parent=1 // pred_check_branch
      %61 = sbr.rel (0) target = $region25
    $region24: #{tpu_custom_call.1} parent=1 // pred_region
      %63 = dma.done [#allocation6], 1024
    $region25: #{tpu_custom_call.1} parent=1 // pred_fallthru
      _
    // Predicated region
    $region26: #{tpu_custom_call.1} parent=1 // pred_check
      _
    $region27: #{tpu_custom_call.1} parent=1 // pred_check_branch
      %65 = sbr.rel (0) target = $region29
    $region28: #{tpu_custom_call.1} parent=1 // pred_region
      %67 = dma.done [#allocation6], 256
    $region29: #{tpu_custom_call.1} parent=1 // pred_fallthru
      _
    %v69 = vld [vmem:[#allocation5] sm:$0xff]
    %v70 = vld [vmem:[#allocation5 + $0x8] sm:$0xff]
    %v71 = vld [vmem:[#allocation5 + $0x10] sm:$0xff]
    %v72 = vld [vmem:[#allocation5 + $0x18] sm:$0xff]
    %v73 = vld [vmem:[#allocation5 + $0x20] sm:$0xff]
    %v74 = vld [vmem:[#allocation5 + $0x28] sm:$0xff]
    %v75 = vld [vmem:[#allocation5 + $0x30] sm:$0xff]
    %v76 = vld [vmem:[#allocation5 + $0x38] sm:$0xff]
    %v77 = vld [vmem:[%s2] sm:$0x1]
    %v79 = vperm.slane %v77, 0
    %v89 = vunpack.c.l.b16 %v69
    %v90 = vunpack.c.h.b16 %v69
    %v91 = vunpack.c.l.b16 %v70
    %v92 = vunpack.c.h.b16 %v70
    %v93 = vunpack.c.l.b16 %v71
    %v94 = vunpack.c.h.b16 %v71
    %v95 = vunpack.c.l.b16 %v72
    %v96 = vunpack.c.h.b16 %v72
    %v97 = vunpack.c.l.b16 %v73
    %v98 = vunpack.c.h.b16 %v73
    %v99 = vunpack.c.l.b16 %v74
    %v100 = vunpack.c.h.b16 %v74
    %v101 = vunpack.c.l.b16 %v75
    %v102 = vunpack.c.h.b16 %v75
    %v103 = vunpack.c.l.b16 %v76
    %v104 = vunpack.c.h.b16 %v76
    %v105 = vpack.c.b16 %v91, %v89
    %v106 = vpack.c.b16 %v92, %v90
    %v107 = vpack.c.b16 %v95, %v93
    %v108 = vpack.c.b16 %v96, %v94
    %v109 = vpack.c.b16 %v99, %v97
    %v110 = vpack.c.b16 %v100, %v98
    %v111 = vpack.c.b16 %v103, %v101
    %v112 = vpack.c.b16 %v104, %v102
    %vm121 = vcmask 523264
    %v123 = vsel %vm121, 0, 0
    %125 = vmatpush.bf16.msra.mxu0 0
    %126 = vmatpush.bf16.msra.mxu0 0
    %127 = vmatpush.bf16.msra.mxu0 0
    %128 = vmatpush.bf16.msra.mxu0 0
    %129 = vmatpush.bf16.msra.mxu0 %v111
    %130 = vmatpush.bf16.msra.mxu0 %v109
    %131 = vmatpush.bf16.msra.mxu0 %v107
    %132 = vmatpush.bf16.msra.mxu0 %v105
    %133 = vmatmul.bf16.gmra.mxu0 %v123
    %v134 = vpop.f32.mrf.mxu0
    %v135 = vadd.f32 0.0, %v134
    %v136 = vpop.f32.mrf.mxu0
    %137 = vdwg.mxu0
    %138 = vmatpush.bf16.msra.mxu0 0
    %139 = vmatpush.bf16.msra.mxu0 0
    %140 = vmatpush.bf16.msra.mxu0 0
    %141 = vmatpush.bf16.msra.mxu0 0
    %142 = vmatpush.bf16.msra.mxu0 %v112
    %143 = vmatpush.bf16.msra.mxu0 %v110
    %144 = vmatpush.bf16.msra.mxu0 %v108
    %145 = vmatpush.bf16.msra.mxu0 %v106
    %146 = vmatmul.bf16.gmra.mxu0 %v123
    %v147 = vpop.f32.mrf.mxu0
    %v148 = vadd.f32 0.0, %v147
    %v149 = vpop.f32.mrf.mxu0
    %150 = vdwg.mxu0
    %v151 = vld [vmem:[#allocation2] sm:$0xf]
    %v152 = vadd.f32 %v151, %v135
    %v153 = vxor.u32 %v152, 2147483648
    %v154 = vmul.f32 %v153, 1.442695
    %v155 = vpow.pop %v154
    %v156 = vadd.f32 %v155, 1.0
    %v157 = vrcp.pop %v156
    %v158 = vmul.f32 %v156, %v157
    %v159 = vsub.f32 1.0, %v158
    %v160 = vmul.f32 %v157, %v159
    %v161 = vadd.f32 %v157, %v160
    %vm162 = vweird.f32 %v156
    %vm163 = vweird.f32 %v157
    %vm164 = vmor %vm162, %vm163
    %v165 = vsel %vm164, %v157, %v161
    %v166 = vand.u32 2147483647, %v156
    %vm167 = vcmp.eq.f32.partialorder %v166, 8.507059e+37
    %v168 = vand.u32 %v156, 2147483648
    %v169 = vor.u32 1.1754944e-38, %v168
    %v170 = vsel %vm167, %v169, %v165
    %v171 = vmul.f32 1.0, %v170
    %v172 = vadd.f32 %v148, %v79
    %v173 = vmul.f32 %v171, %v172
    %v175 = vrot.slane %v151, 2
    %v177 = vadd.f32 %v175, %v173
    %v178 = vtanh.pop %v177
    %v179 = vsub.f32 1.0, %v171
    %181 = vrot.lane.b32.xlu0 %v178, 64
    %v182 = vpop.permute.xlu0 %181
    %v184 = vmul.f32 %v179, %v182
    %v185 = vmul.f32 %v171, 0.0
    %v186 = vadd.f32 %v184, %v185
    %v187 = vld [vmem:[#allocation7] sm:$0x3]
    %vm188 = vcmp.ne.f32.partialorder %v187, 0.0
    %190 = vst [vmem:[#allocation1] ss:$4 sm:$0xff] %v186
    %v191 = vld.sshfl [vmem:[#allocation1] sm:$0xff pattern:$0x73625140]
    %192 = vrot.lane.b32.xlu0 %v191, 64
    %v193 = vpop.permute.xlu0 %192
    %v195 = vsel %vm188, %v193, 0.0
    %vm196 = vcmask 517120
    %197 = vst.msk [vmem:[#allocation8] sm:$0x3] %vm196, %v195
    %v198 = vpack.c.bf16 %v195, %v195
    %v200 = vsel %vm121, %v198, 0
    %202 = vmatpush.bf16.msra.mxu0 0
    %203 = vmatpush.bf16.msra.mxu0 0
    %204 = vmatpush.bf16.msra.mxu0 0
    %205 = vmatpush.bf16.msra.mxu0 0
    %206 = vmatpush.bf16.msra.mxu0 %v111
    %207 = vmatpush.bf16.msra.mxu0 %v109
    %208 = vmatpush.bf16.msra.mxu0 %v107
    %209 = vmatpush.bf16.msra.mxu0 %v105
    %210 = vmatmul.bf16.gmra.mxu0 %v200
    %v211 = vpop.f32.mrf.mxu0
    %v212 = vadd.f32 0.0, %v211
    %v213 = vpop.f32.mrf.mxu0
    %214 = vdwg.mxu0
    %215 = vmatpush.bf16.msra.mxu0 0
    %216 = vmatpush.bf16.msra.mxu0 0
    %217 = vmatpush.bf16.msra.mxu0 0
    %218 = vmatpush.bf16.msra.mxu0 0
    %219 = vmatpush.bf16.msra.mxu0 %v112
    %220 = vmatpush.bf16.msra.mxu0 %v110
    %221 = vmatpush.bf16.msra.mxu0 %v108
    %222 = vmatpush.bf16.msra.mxu0 %v106
    %223 = vmatmul.bf16.gmra.mxu0 %v200
    %v224 = vpop.f32.mrf.mxu0
    %v225 = vadd.f32 0.0, %v224
    %v226 = vpop.f32.mrf.mxu0
    %227 = vdwg.mxu0
    %s228 = scalar_lea.vmem [#allocation2], 4
    %v229 = vld [vmem:[%s228] sm:$0xf]
    %v230 = vadd.f32 %v229, %v212
    %v231 = vxor.u32 %v230, 2147483648
    %v232 = vmul.f32 %v231, 1.442695
    %v233 = vpow.pop %v232
    %v234 = vadd.f32 %v233, 1.0
    %v235 = vrcp.pop %v234
    %v236 = vmul.f32 %v234, %v235
    %v237 = vsub.f32 1.0, %v236
    %v238 = vmul.f32 %v235, %v237
    %v239 = vadd.f32 %v235, %v238
    %vm240 = vweird.f32 %v234
    %vm241 = vweird.f32 %v235
    %vm242 = vmor %vm240, %vm241
    %v243 = vsel %vm242, %v235, %v239
    %v244 = vand.u32 2147483647, %v234
    %vm245 = vcmp.eq.f32.partialorder %v244, 8.507059e+37
    %v246 = vand.u32 %v234, 2147483648
    %v247 = vor.u32 1.1754944e-38, %v246
    %v248 = vsel %vm245, %v247, %v243
    %v249 = vmul.f32 1.0, %v248
    %v250 = vadd.f32 %v225, %v79
    %v251 = vmul.f32 %v249, %v250
    %v253 = vrot.slane %v229, 2
    %v255 = vadd.f32 %v253, %v251
    %v256 = vtanh.pop %v255
    %v257 = vsub.f32 1.0, %v249
    %259 = vrot.lane.b32.xlu0 %v256, 64
    %v260 = vpop.permute.xlu0 %259
    %v262 = vmul.f32 %v257, %v260
    %264 = vrot.lane.b32.xlu0 %v195, 64
    %v265 = vpop.permute.xlu0 %264
    %v267 = vmul.f32 %v249, %v265
    %v268 = vadd.f32 %v262, %v267
    %s269 = scalar_lea.vmem [#allocation7], 2
    %v270 = vld [vmem:[%s269] sm:$0x3]
    %vm271 = vcmp.ne.f32.partialorder %v270, 0.0
    %273 = vst [vmem:[#allocation1] ss:$4 sm:$0xff] %v268
    %v274 = vld.sshfl [vmem:[#allocation1] sm:$0xff pattern:$0x73625140]
    %275 = vrot.lane.b32.xlu0 %v274, 64
    %v276 = vpop.permute.xlu0 %275
    %v278 = vsel %vm271, %v276, 0.0
    %s279 = scalar_lea.vmem [#allocation8], 2
    %280 = vst.msk [vmem:[%s279] sm:$0x3] %vm196, %v278
    %281 = vst [vmem:[#allocation1] ss:$4 sm:$0xff] %v268
    %v282 = vld.sshfl [vmem:[#allocation1] sm:$0xff pattern:$0x73625140]
    %283 = vrot.lane.b32.xlu0 %v282, 64
    %v284 = vpop.permute.xlu0 %283
    %v286 = vsel %vm271, %v284, %v195
    %v287 = vpack.c.bf16 %v286, %v286
    %v289 = vsel %vm121, %v287, 0
    %291 = vmatpush.bf16.msra.mxu0 0
    %292 = vmatpush.bf16.msra.mxu0 0
    %293 = vmatpush.bf16.msra.mxu0 0
    %294 = vmatpush.bf16.msra.mxu0 0
    %295 = vmatpush.bf16.msra.mxu0 %v111
    %296 = vmatpush.bf16.msra.mxu0 %v109
    %297 = vmatpush.bf16.msra.mxu0 %v107
    %298 = vmatpush.bf16.msra.mxu0 %v105
    %299 = vmatmul.bf16.gmra.mxu0 %v289
    %v300 = vpop.f32.mrf.mxu0
    %v301 = vadd.f32 0.0, %v300
    %v302 = vpop.f32.mrf.mxu0
    %303 = vdwg.mxu0
    %304 = vmatpush.bf16.msra.mxu0 0
    %305 = vmatpush.bf16.msra.mxu0 0
    %306 = vmatpush.bf16.msra.mxu0 0
    %307 = vmatpush.bf16.msra.mxu0 0
    %308 = vmatpush.bf16.msra.mxu0 %v112
    %309 = vmatpush.bf16.msra.mxu0 %v110
    %310 = vmatpush.bf16.msra.mxu0 %v108
    %311 = vmatpush.bf16.msra.mxu0 %v106
    %312 = vmatmul.bf16.gmra.mxu0 %v289
    %v313 = vpop.f32.mrf.mxu0
    %v314 = vadd.f32 0.0, %v313
    %v315 = vpop.f32.mrf.mxu0
    %316 = vdwg.mxu0
    %s317 = scalar_lea.vmem [#allocation2], 8
    %v318 = vld [vmem:[%s317] sm:$0xf]
    %v319 = vadd.f32 %v318, %v301
    %v320 = vxor.u32 %v319, 2147483648
    %v321 = vmul.f32 %v320, 1.442695
    %v322 = vpow.pop %v321
    %v323 = vadd.f32 %v322, 1.0
    %v324 = vrcp.pop %v323
    %v325 = vmul.f32 %v323, %v324
    %v326 = vsub.f32 1.0, %v325
    %v327 = vmul.f32 %v324, %v326
    %v328 = vadd.f32 %v324, %v327
    %vm329 = vweird.f32 %v323
    %vm330 = vweird.f32 %v324
    %vm331 = vmor %vm329, %vm330
    %v332 = vsel %vm331, %v324, %v328
    %v333 = vand.u32 2147483647, %v323
    %vm334 = vcmp.eq.f32.partialorder %v333, 8.507059e+37
    %v335 = vand.u32 %v323, 2147483648
    %v336 = vor.u32 1.1754944e-38, %v335
    %v337 = vsel %vm334, %v336, %v332
    %v338 = vmul.f32 1.0, %v337
    %v339 = vadd.f32 %v314, %v79
    %v340 = vmul.f32 %v338, %v339
    %v342 = vrot.slane %v318, 2
    %v344 = vadd.f32 %v342, %v340
    %v345 = vtanh.pop %v344
    %v346 = vsub.f32 1.0, %v338
    %348 = vrot.lane.b32.xlu0 %v345, 64
    %v349 = vpop.permute.xlu0 %348
    %v351 = vmul.f32 %v346, %v349
    %353 = vrot.lane.b32.xlu0 %v286, 64
    %v354 = vpop.permute.xlu0 %353
    %v356 = vmul.f32 %v338, %v354
    %v357 = vadd.f32 %v351, %v356
    %s358 = scalar_lea.vmem [#allocation7], 4
    %v359 = vld [vmem:[%s358] sm:$0x3]
    %vm360 = vcmp.ne.f32.partialorder %v359, 0.0
    %362 = vst [vmem:[#allocation1] ss:$4 sm:$0xff] %v357
    %v363 = vld.sshfl [vmem:[#allocation1] sm:$0xff pattern:$0x73625140]
    %364 = vrot.lane.b32.xlu0 %v363, 64
    %v365 = vpop.permute.xlu0 %364
    %v367 = vsel %vm360, %v365, 0.0
    %s368 = scalar_lea.vmem [#allocation8], 4
    %369 = vst.msk [vmem:[%s368] sm:$0x3] %vm196, %v367
    %370 = vst [vmem:[#allocation1] ss:$4 sm:$0xff] %v357
    %v371 = vld.sshfl [vmem:[#allocation1] sm:$0xff pattern:$0x73625140]
    %372 = vrot.lane.b32.xlu0 %v371, 64
    %v373 = vpop.permute.xlu0 %372
    %v375 = vsel %vm360, %v373, %v286
    %v376 = vpack.c.bf16 %v375, %v375
    %v378 = vsel %vm121, %v376, 0
    %380 = vmatpush.bf16.msra.mxu0 0
    %381 = vmatpush.bf16.msra.mxu0 0
    %382 = vmatpush.bf16.msra.mxu0 0
    %383 = vmatpush.bf16.msra.mxu0 0
    %384 = vmatpush.bf16.msra.mxu0 %v111
    %385 = vmatpush.bf16.msra.mxu0 %v109
    %386 = vmatpush.bf16.msra.mxu0 %v107
    %387 = vmatpush.bf16.msra.mxu0 %v105
    %388 = vmatmul.bf16.gmra.mxu0 %v378
    %v389 = vpop.f32.mrf.mxu0
    %v390 = vadd.f32 0.0, %v389
    %v391 = vpop.f32.mrf.mxu0
    %392 = vdwg.mxu0
    %393 = vmatpush.bf16.msra.mxu0 0
    %394 = vmatpush.bf16.msra.mxu0 0
    %395 = vmatpush.bf16.msra.mxu0 0
    %396 = vmatpush.bf16.msra.mxu0 0
    %397 = vmatpush.bf16.msra.mxu0 %v112
    %398 = vmatpush.bf16.msra.mxu0 %v110
    %399 = vmatpush.bf16.msra.mxu0 %v108
    %400 = vmatpush.bf16.msra.mxu0 %v106
    %401 = vmatmul.bf16.gmra.mxu0 %v378
    %v402 = vpop.f32.mrf.mxu0
    %v403 = vadd.f32 0.0, %v402
    %v404 = vpop.f32.mrf.mxu0
    %405 = vdwg.mxu0
    %s406 = scalar_lea.vmem [#allocation2], 12
    %v407 = vld [vmem:[%s406] sm:$0xf]
    %v408 = vadd.f32 %v407, %v390
    %v409 = vxor.u32 %v408, 2147483648
    %v410 = vmul.f32 %v409, 1.442695
    %v411 = vpow.pop %v410
    %v412 = vadd.f32 %v411, 1.0
    %v413 = vrcp.pop %v412
    %v414 = vmul.f32 %v412, %v413
    %v415 = vsub.f32 1.0, %v414
    %v416 = vmul.f32 %v413, %v415
    %v417 = vadd.f32 %v413, %v416
    %vm418 = vweird.f32 %v412
    %vm419 = vweird.f32 %v413
    %vm420 = vmor %vm418, %vm419
    %v421 = vsel %vm420, %v413, %v417
    %v422 = vand.u32 2147483647, %v412
    %vm423 = vcmp.eq.f32.partialorder %v422, 8.507059e+37
    %v424 = vand.u32 %v412, 2147483648
    %v425 = vor.u32 1.1754944e-38, %v424
    %v426 = vsel %vm423, %v425, %v421
    %v427 = vmul.f32 1.0, %v426
    %v428 = vadd.f32 %v403, %v79
    %v429 = vmul.f32 %v427, %v428
    %v431 = vrot.slane %v407, 2
    %v433 = vadd.f32 %v431, %v429
    %v434 = vtanh.pop %v433
    %v435 = vsub.f32 1.0, %v427
    %437 = vrot.lane.b32.xlu0 %v434, 64
    %v438 = vpop.permute.xlu0 %437
    %v440 = vmul.f32 %v435, %v438
    %442 = vrot.lane.b32.xlu0 %v375, 64
    %v443 = vpop.permute.xlu0 %442
    %v445 = vmul.f32 %v427, %v443
    %v446 = vadd.f32 %v440, %v445
    %s447 = scalar_lea.vmem [#allocation7], 6
    %v448 = vld [vmem:[%s447] sm:$0x3]
    %vm449 = vcmp.ne.f32.partialorder %v448, 0.0
    %451 = vst [vmem:[#allocation1] ss:$4 sm:$0xff] %v446
    %v452 = vld.sshfl [vmem:[#allocation1] sm:$0xff pattern:$0x73625140]
    %453 = vrot.lane.b32.xlu0 %v452, 64
    %v454 = vpop.permute.xlu0 %453
    %v456 = vsel %vm449, %v454, 0.0
    %s457 = scalar_lea.vmem [#allocation8], 6
    %458 = vst.msk [vmem:[%s457] sm:$0x3] %vm196, %v456
    %459 = vst [vmem:[#allocation1] ss:$4 sm:$0xff] %v446
    %v460 = vld.sshfl [vmem:[#allocation1] sm:$0xff pattern:$0x73625140]
    %461 = vrot.lane.b32.xlu0 %v460, 64
    %v462 = vpop.permute.xlu0 %461
    %v464 = vsel %vm449, %v462, %v375
    %v465 = vpack.c.bf16 %v464, %v464
    %v467 = vsel %vm121, %v465, 0
    %469 = vmatpush.bf16.msra.mxu0 0
    %470 = vmatpush.bf16.msra.mxu0 0
    %471 = vmatpush.bf16.msra.mxu0 0
    %472 = vmatpush.bf16.msra.mxu0 0
    %473 = vmatpush.bf16.msra.mxu0 %v111
    %474 = vmatpush.bf16.msra.mxu0 %v109
    %475 = vmatpush.bf16.msra.mxu0 %v107
    %476 = vmatpush.bf16.msra.mxu0 %v105
    %477 = vmatmul.bf16.gmra.mxu0 %v467
    %v478 = vpop.f32.mrf.mxu0
    %v479 = vadd.f32 0.0, %v478
    %v480 = vpop.f32.mrf.mxu0
    %481 = vdwg.mxu0
    %482 = vmatpush.bf16.msra.mxu0 0
    %483 = vmatpush.bf16.msra.mxu0 0
    %484 = vmatpush.bf16.msra.mxu0 0
    %485 = vmatpush.bf16.msra.mxu0 0
    %486 = vmatpush.bf16.msra.mxu0 %v112
    %487 = vmatpush.bf16.msra.mxu0 %v110
    %488 = vmatpush.bf16.msra.mxu0 %v108
    %489 = vmatpush.bf16.msra.mxu0 %v106
    %490 = vmatmul.bf16.gmra.mxu0 %v467
    %v491 = vpop.f32.mrf.mxu0
    %v492 = vadd.f32 0.0, %v491
    %v493 = vpop.f32.mrf.mxu0
    %494 = vdwg.mxu0
    %s495 = scalar_lea.vmem [#allocation2], 16
    %v496 = vld [vmem:[%s495] sm:$0xf]
    %v497 = vadd.f32 %v496, %v479
    %v498 = vxor.u32 %v497, 2147483648
    %v499 = vmul.f32 %v498, 1.442695
    %v500 = vpow.pop %v499
    %v501 = vadd.f32 %v500, 1.0
    %v502 = vrcp.pop %v501
    %v503 = vmul.f32 %v501, %v502
    %v504 = vsub.f32 1.0, %v503
    %v505 = vmul.f32 %v502, %v504
    %v506 = vadd.f32 %v502, %v505
    %vm507 = vweird.f32 %v501
    %vm508 = vweird.f32 %v502
    %vm509 = vmor %vm507, %vm508
    %v510 = vsel %vm509, %v502, %v506
    %v511 = vand.u32 2147483647, %v501
    %vm512 = vcmp.eq.f32.partialorder %v511, 8.507059e+37
    %v513 = vand.u32 %v501, 2147483648
    %v514 = vor.u32 1.1754944e-38, %v513
    %v515 = vsel %vm512, %v514, %v510
    %v516 = vmul.f32 1.0, %v515
    %v517 = vadd.f32 %v492, %v79
    %v518 = vmul.f32 %v516, %v517
    %v520 = vrot.slane %v496, 2
    %v522 = vadd.f32 %v520, %v518
    %v523 = vtanh.pop %v522
    %v524 = vsub.f32 1.0, %v516
    %526 = vrot.lane.b32.xlu0 %v523, 64
    %v527 = vpop.permute.xlu0 %526
    %v529 = vmul.f32 %v524, %v527
    %531 = vrot.lane.b32.xlu0 %v464, 64
    %v532 = vpop.permute.xlu0 %531
    %v534 = vmul.f32 %v516, %v532
    %v535 = vadd.f32 %v529, %v534
    %s536 = scalar_lea.vmem [#allocation7], 8
    %v537 = vld [vmem:[%s536] sm:$0x3]
    %vm538 = vcmp.ne.f32.partialorder %v537, 0.0
    %540 = vst [vmem:[#allocation1] ss:$4 sm:$0xff] %v535
    %v541 = vld.sshfl [vmem:[#allocation1] sm:$0xff pattern:$0x73625140]
    %542 = vrot.lane.b32.xlu0 %v541, 64
    %v543 = vpop.permute.xlu0 %542
    %v545 = vsel %vm538, %v543, 0.0
    %s546 = scalar_lea.vmem [#allocation8], 8
    %547 = vst.msk [vmem:[%s546] sm:$0x3] %vm196, %v545
    %548 = vst [vmem:[#allocation1] ss:$4 sm:$0xff] %v535
    %v549 = vld.sshfl [vmem:[#allocation1] sm:$0xff pattern:$0x73625140]
    %550 = vrot.lane.b32.xlu0 %v549, 64
    %v551 = vpop.permute.xlu0 %550
    %v553 = vsel %vm538, %v551, %v464
    %v554 = vpack.c.bf16 %v553, %v553
    %v556 = vsel %vm121, %v554, 0
    %558 = vmatpush.bf16.msra.mxu0 0
    %559 = vmatpush.bf16.msra.mxu0 0
    %560 = vmatpush.bf16.msra.mxu0 0
    %561 = vmatpush.bf16.msra.mxu0 0
    %562 = vmatpush.bf16.msra.mxu0 %v111
    %563 = vmatpush.bf16.msra.mxu0 %v109
    %564 = vmatpush.bf16.msra.mxu0 %v107
    %565 = vmatpush.bf16.msra.mxu0 %v105
    %566 = vmatmul.bf16.gmra.mxu0 %v556
    %v567 = vpop.f32.mrf.mxu0
    %v568 = vadd.f32 0.0, %v567
    %v569 = vpop.f32.mrf.mxu0
    %570 = vdwg.mxu0
    %571 = vmatpush.bf16.msra.mxu0 0
    %572 = vmatpush.bf16.msra.mxu0 0
    %573 = vmatpush.bf16.msra.mxu0 0
    %574 = vmatpush.bf16.msra.mxu0 0
    %575 = vmatpush.bf16.msra.mxu0 %v112
    %576 = vmatpush.bf16.msra.mxu0 %v110
    %577 = vmatpush.bf16.msra.mxu0 %v108
    %578 = vmatpush.bf16.msra.mxu0 %v106
    %579 = vmatmul.bf16.gmra.mxu0 %v556
    %v580 = vpop.f32.mrf.mxu0
    %v581 = vadd.f32 0.0, %v580
    %v582 = vpop.f32.mrf.mxu0
    %583 = vdwg.mxu0
    %s584 = scalar_lea.vmem [#allocation2], 20
    %v585 = vld [vmem:[%s584] sm:$0xf]
    %v586 = vadd.f32 %v585, %v568
    %v587 = vxor.u32 %v586, 2147483648
    %v588 = vmul.f32 %v587, 1.442695
    %v589 = vpow.pop %v588
    %v590 = vadd.f32 %v589, 1.0
    %v591 = vrcp.pop %v590
    %v592 = vmul.f32 %v590, %v591
    %v593 = vsub.f32 1.0, %v592
    %v594 = vmul.f32 %v591, %v593
    %v595 = vadd.f32 %v591, %v594
    %vm596 = vweird.f32 %v590
    %vm597 = vweird.f32 %v591
    %vm598 = vmor %vm596, %vm597
    %v599 = vsel %vm598, %v591, %v595
    %v600 = vand.u32 2147483647, %v590
    %vm601 = vcmp.eq.f32.partialorder %v600, 8.507059e+37
    %v602 = vand.u32 %v590, 2147483648
    %v603 = vor.u32 1.1754944e-38, %v602
    %v604 = vsel %vm601, %v603, %v599
    %v605 = vmul.f32 1.0, %v604
    %v606 = vadd.f32 %v581, %v79
    %v607 = vmul.f32 %v605, %v606
    %v609 = vrot.slane %v585, 2
    %v611 = vadd.f32 %v609, %v607
    %v612 = vtanh.pop %v611
    %v613 = vsub.f32 1.0, %v605
    %615 = vrot.lane.b32.xlu0 %v612, 64
    %v616 = vpop.permute.xlu0 %615
    %v618 = vmul.f32 %v613, %v616
    %620 = vrot.lane.b32.xlu0 %v553, 64
    %v621 = vpop.permute.xlu0 %620
    %v623 = vmul.f32 %v605, %v621
    %v624 = vadd.f32 %v618, %v623
    %s625 = scalar_lea.vmem [#allocation7], 10
    %v626 = vld [vmem:[%s625] sm:$0x3]
    %vm627 = vcmp.ne.f32.partialorder %v626, 0.0
    %629 = vst [vmem:[#allocation1] ss:$4 sm:$0xff] %v624
    %v630 = vld.sshfl [vmem:[#allocation1] sm:$0xff pattern:$0x73625140]
    %631 = vrot.lane.b32.xlu0 %v630, 64
    %v632 = vpop.permute.xlu0 %631
    %v634 = vsel %vm627, %v632, 0.0
    %s635 = scalar_lea.vmem [#allocation8], 10
    %636 = vst.msk [vmem:[%s635] sm:$0x3] %vm196, %v634
    %637 = vst [vmem:[#allocation1] ss:$4 sm:$0xff] %v624
    %v638 = vld.sshfl [vmem:[#allocation1] sm:$0xff pattern:$0x73625140]
    %639 = vrot.lane.b32.xlu0 %v638, 64
    %v640 = vpop.permute.xlu0 %639
    %v642 = vsel %vm627, %v640, %v553
    %v643 = vpack.c.bf16 %v642, %v642
    %v645 = vsel %vm121, %v643, 0
    %647 = vmatpush.bf16.msra.mxu0 0
    %648 = vmatpush.bf16.msra.mxu0 0
    %649 = vmatpush.bf16.msra.mxu0 0
    %650 = vmatpush.bf16.msra.mxu0 0
    %651 = vmatpush.bf16.msra.mxu0 %v111
    %652 = vmatpush.bf16.msra.mxu0 %v109
    %653 = vmatpush.bf16.msra.mxu0 %v107
    %654 = vmatpush.bf16.msra.mxu0 %v105
    %655 = vmatmul.bf16.gmra.mxu0 %v645
    %v656 = vpop.f32.mrf.mxu0
    %v657 = vadd.f32 0.0, %v656
    %v658 = vpop.f32.mrf.mxu0
    %659 = vdwg.mxu0
    %660 = vmatpush.bf16.msra.mxu0 0
    %661 = vmatpush.bf16.msra.mxu0 0
    %662 = vmatpush.bf16.msra.mxu0 0
    %663 = vmatpush.bf16.msra.mxu0 0
    %664 = vmatpush.bf16.msra.mxu0 %v112
    %665 = vmatpush.bf16.msra.mxu0 %v110
    %666 = vmatpush.bf16.msra.mxu0 %v108
    %667 = vmatpush.bf16.msra.mxu0 %v106
    %668 = vmatmul.bf16.gmra.mxu0 %v645
    %v669 = vpop.f32.mrf.mxu0
    %v670 = vadd.f32 0.0, %v669
    %v671 = vpop.f32.mrf.mxu0
    %672 = vdwg.mxu0
    %s673 = scalar_lea.vmem [#allocation2], 24
    %v674 = vld [vmem:[%s673] sm:$0xf]
    %v675 = vadd.f32 %v674, %v657
    %v676 = vxor.u32 %v675, 2147483648
    %v677 = vmul.f32 %v676, 1.442695
    %v678 = vpow.pop %v677
    %v679 = vadd.f32 %v678, 1.0
    %v680 = vrcp.pop %v679
    %v681 = vmul.f32 %v679, %v680
    %v682 = vsub.f32 1.0, %v681
    %v683 = vmul.f32 %v680, %v682
    %v684 = vadd.f32 %v680, %v683
    %vm685 = vweird.f32 %v679
    %vm686 = vweird.f32 %v680
    %vm687 = vmor %vm685, %vm686
    %v688 = vsel %vm687, %v680, %v684
    %v689 = vand.u32 2147483647, %v679
    %vm690 = vcmp.eq.f32.partialorder %v689, 8.507059e+37
    %v691 = vand.u32 %v679, 2147483648
    %v692 = vor.u32 1.1754944e-38, %v691
    %v693 = vsel %vm690, %v692, %v688
    %v694 = vmul.f32 1.0, %v693
    %v695 = vadd.f32 %v670, %v79
    %v696 = vmul.f32 %v694, %v695
    %v698 = vrot.slane %v674, 2
    %v700 = vadd.f32 %v698, %v696
    %v701 = vtanh.pop %v700
    %v702 = vsub.f32 1.0, %v694
    %704 = vrot.lane.b32.xlu0 %v701, 64
    %v705 = vpop.permute.xlu0 %704
    %v707 = vmul.f32 %v702, %v705
    %709 = vrot.lane.b32.xlu0 %v642, 64
    %v710 = vpop.permute.xlu0 %709
    %v712 = vmul.f32 %v694, %v710
    %v713 = vadd.f32 %v707, %v712
    %s714 = scalar_lea.vmem [#allocation7], 12
    %v715 = vld [vmem:[%s714] sm:$0x3]
    %vm716 = vcmp.ne.f32.partialorder %v715, 0.0
    %718 = vst [vmem:[#allocation1] ss:$4 sm:$0xff] %v713
    %v719 = vld.sshfl [vmem:[#allocation1] sm:$0xff pattern:$0x73625140]
    %720 = vrot.lane.b32.xlu0 %v719, 64
    %v721 = vpop.permute.xlu0 %720
    %v723 = vsel %vm716, %v721, 0.0
    %s724 = scalar_lea.vmem [#allocation8], 12
    %725 = vst.msk [vmem:[%s724] sm:$0x3] %vm196, %v723
    %726 = vst [vmem:[#allocation1] ss:$4 sm:$0xff] %v713
    %v727 = vld.sshfl [vmem:[#allocation1] sm:$0xff pattern:$0x73625140]
    %728 = vrot.lane.b32.xlu0 %v727, 64
    %v729 = vpop.permute.xlu0 %728
    %v731 = vsel %vm716, %v729, %v642
    %v732 = vpack.c.bf16 %v731, %v731
    %v734 = vsel %vm121, %v732, 0
    %736 = vmatpush.bf16.msra.mxu0 0
    %737 = vmatpush.bf16.msra.mxu0 0
    %738 = vmatpush.bf16.msra.mxu0 0
    %739 = vmatpush.bf16.msra.mxu0 0
    %740 = vmatpush.bf16.msra.mxu0 %v111
    %741 = vmatpush.bf16.msra.mxu0 %v109
    %742 = vmatpush.bf16.msra.mxu0 %v107
    %743 = vmatpush.bf16.msra.mxu0 %v105
    %744 = vmatmul.bf16.gmra.mxu0 %v734
    %v745 = vpop.f32.mrf.mxu0
    %v746 = vadd.f32 0.0, %v745
    %v747 = vpop.f32.mrf.mxu0
    %748 = vdwg.mxu0
    %749 = vmatpush.bf16.msra.mxu0 0
    %750 = vmatpush.bf16.msra.mxu0 0
    %751 = vmatpush.bf16.msra.mxu0 0
    %752 = vmatpush.bf16.msra.mxu0 0
    %753 = vmatpush.bf16.msra.mxu0 %v112
    %754 = vmatpush.bf16.msra.mxu0 %v110
    %755 = vmatpush.bf16.msra.mxu0 %v108
    %756 = vmatpush.bf16.msra.mxu0 %v106
    %757 = vmatmul.bf16.gmra.mxu0 %v734
    %v758 = vpop.f32.mrf.mxu0
    %v759 = vadd.f32 0.0, %v758
    %v760 = vpop.f32.mrf.mxu0
    %761 = vdwg.mxu0
    %s762 = scalar_lea.vmem [#allocation2], 28
    %v763 = vld [vmem:[%s762] sm:$0xf]
    %v764 = vadd.f32 %v763, %v746
    %v765 = vxor.u32 %v764, 2147483648
    %v766 = vmul.f32 %v765, 1.442695
    %v767 = vpow.pop %v766
    %v768 = vadd.f32 %v767, 1.0
    %v769 = vrcp.pop %v768
    %v770 = vmul.f32 %v768, %v769
    %v771 = vsub.f32 1.0, %v770
    %v772 = vmul.f32 %v769, %v771
    %v773 = vadd.f32 %v769, %v772
    %vm774 = vweird.f32 %v768
    %vm775 = vweird.f32 %v769
    %vm776 = vmor %vm774, %vm775
    %v777 = vsel %vm776, %v769, %v773
    %v778 = vand.u32 2147483647, %v768
    %vm779 = vcmp.eq.f32.partialorder %v778, 8.507059e+37
    %v780 = vand.u32 %v768, 2147483648
    %v781 = vor.u32 1.1754944e-38, %v780
    %v782 = vsel %vm779, %v781, %v777
    %v783 = vmul.f32 1.0, %v782
    %v784 = vadd.f32 %v759, %v79
    %v785 = vmul.f32 %v783, %v784
    %v787 = vrot.slane %v763, 2
    %v789 = vadd.f32 %v787, %v785
    %v790 = vtanh.pop %v789
    %v791 = vsub.f32 1.0, %v783
    %793 = vrot.lane.b32.xlu0 %v790, 64
    %v794 = vpop.permute.xlu0 %793
    %v796 = vmul.f32 %v791, %v794
    %798 = vrot.lane.b32.xlu0 %v731, 64
    %v799 = vpop.permute.xlu0 %798
    %v801 = vmul.f32 %v783, %v799
    %v802 = vadd.f32 %v796, %v801
    %s803 = scalar_lea.vmem [#allocation7], 14
    %v804 = vld [vmem:[%s803] sm:$0x3]
    %vm805 = vcmp.ne.f32.partialorder %v804, 0.0
    %807 = vst [vmem:[#allocation1] ss:$4 sm:$0xff] %v802
    %v808 = vld.sshfl [vmem:[#allocation1] sm:$0xff pattern:$0x73625140]
    %809 = vrot.lane.b32.xlu0 %v808, 64
    %v810 = vpop.permute.xlu0 %809
    %v812 = vsel %vm805, %v810, 0.0
    %s813 = scalar_lea.vmem [#allocation8], 14
    %814 = vst.msk [vmem:[%s813] sm:$0x3] %vm196, %v812
    %815 = vst [vmem:[#allocation1] ss:$4 sm:$0xff] %v802
    %v816 = vld.sshfl [vmem:[#allocation1] sm:$0xff pattern:$0x73625140]
    %817 = vrot.lane.b32.xlu0 %v816, 64
    %v818 = vpop.permute.xlu0 %817
    %v820 = vsel %vm805, %v818, %v731
    %821 = vst.msk [vmem:[#allocation9] sm:$0x3] %vm196, %v820
    // Predicated region
    $region30: #{tpu_custom_call.1} parent=1 // pred_check
      _
    $region31: #{tpu_custom_call.1} parent=1 // pred_check_branch
      %823 = sbr.rel (0) target = $region33
    $region32: #{tpu_custom_call.1} parent=1 // pred_region
      %825 = vsyncadd [#allocation4], 0
      %s826 = sshll.u32 [#allocation8], 4
      %s827 = int_to_ptr.vmem [resolvable:$true] %s826
      %s828 = sshll.u32 %s4, 4
      %s829 = int_to_ptr.hbm [resolvable:$true] %s828
      %834 = dma.vmem_to_hbm [thread:$0]  %s827, 256, %s829, [#allocation4], 32, 32, 2
    $region33: #{tpu_custom_call.1} parent=1 // pred_fallthru
      _
    // Predicated region
    $region34: #{tpu_custom_call.1} parent=1 // pred_check
      _
    $region35: #{tpu_custom_call.1} parent=1 // pred_check_branch
      %836 = sbr.rel (0) target = $region37
    $region36: #{tpu_custom_call.1} parent=1 // pred_region
      %838 = vsyncadd [#allocation10], 0
      %s840 = sshll.u32 [#allocation9], 4
      %s841 = int_to_ptr.vmem [resolvable:$true] %s840
      %s842 = sshll.u32 %s5, 4
      %s843 = int_to_ptr.hbm [resolvable:$true] %s842
      %845 = dma.vmem_to_hbm [thread:$0]  %s841, 32, %s843, [#allocation10]
    $region37: #{tpu_custom_call.1} parent=1 // pred_fallthru
      _
    // Predicated region
    $region38: #{tpu_custom_call.1} parent=1 // pred_check
      _
    $region39: #{tpu_custom_call.1} parent=1 // pred_check_branch
      %847 = sbr.rel (0) target = $region41
    $region40: #{tpu_custom_call.1} parent=1 // pred_region
      %849 = dma.done [#allocation4], 256
    $region41: #{tpu_custom_call.1} parent=1 // pred_fallthru
      _
    // Predicated region
    $region42: #{tpu_custom_call.1} parent=1 // pred_check
      _
    $region43: #{tpu_custom_call.1} parent=1 // pred_check_branch
      %851 = sbr.rel (0) target = $region45
    $region44: #{tpu_custom_call.1} parent=1 // pred_region
      %853 = dma.done [#allocation10], 32
    $region45: #{tpu_custom_call.1} parent=1 // pred_fallthru
      _
    %854 = vsyncpa [#allocation3], 1
    %855 = vsyncpa [#allocation6], 1
    %856 = vsyncpa [#allocation4], 1
    %857 = vsyncpa [#allocation10], 1

</llo_original>
